<compile_context>
chip_gen: v5e
topology: v5e:2x2
jax: 0.10.0
libtpu: 0.0.40
codegen_flags: <defaults>
</compile_context>

<pallas_src>
import functools

import jax
import jax.numpy as jnp
from jax.experimental import pallas as pl
from jax.experimental.pallas import tpu as pltpu


# ------------------------------- helpers ------------------------------------

def _tile(dim, target, align):
    """Largest `align`-aligned divisor of `dim` that is <= `target`.

    Falls back to the full dim only when dim <= target, or when dim has no
    align-aligned divisor (small / odd dims, where a partial block would be an
    illegal (8,128) tile anyway)."""
    if dim <= target:
        return dim
    t = (target // align) * align
    while t >= align:
        if dim % t == 0:
            return t
        t -= align
    return dim


def _vmem_limit(working_set_bytes):
    """Explicit scoped-VMEM budget with headroom (v5e default is only 16 MiB)."""
    return int(min(max(working_set_bytes + (4 << 20), 32 << 20), 128 << 20))


def _gelu(y):
    # tanh-approximate GELU (EUP tanh).
    return 0.5 * y * (1.0 + jnp.tanh(0.7978845608028654 * (y + 0.044715 * y * y * y)))


# ------------------- fused LayerNorm -> GEMM (+bias/activation) --------------

def _ln_linear_kernel(x_ref, g_ref, be_ref, w_ref, *rest, has_bias, activation, eps):
    if has_bias:
        b_ref, o_ref, xn_ref = rest
    else:
        b_ref = None
        o_ref, xn_ref = rest

    j = pl.program_id(1)

    @pl.when(j == 0)
    def _():
        # LN statistics in f32; normalized rows stored in the input dtype so the
        # MXU below runs on the native (ideally bf16) operand dtype.
        x = x_ref[...].astype(jnp.float32)
        mean = jnp.mean(x, axis=-1, keepdims=True)
        var = jnp.mean((x - mean) ** 2, axis=-1, keepdims=True)
        xn = (x - mean) * jax.lax.rsqrt(var + eps)
        xn_ref[...] = (xn * g_ref[...] + be_ref[...]).astype(xn_ref.dtype)

    y = jnp.dot(xn_ref[...], w_ref[...], preferred_element_type=jnp.float32)
    if has_bias:
        y = y + b_ref[...]
    if activation == "gelu":
        y = _gelu(y)
    o_ref[...] = y.astype(o_ref.dtype)


def ln_linear(x2d, gamma, beta, w, b=None, activation=None, *,
              tm_target=256, tn_target=512, eps=1e-5):
    M, K = x2d.shape
    Kw, N = w.shape
    assert K == Kw
    tm = _tile(M, tm_target, 8)
    tn = _tile(N, tn_target, 128)
    grid = (M // tm, N // tn)

    in_specs = [
        pl.BlockSpec((tm, K), lambda i, j: (i, 0)),   # full row needed for LN
        pl.BlockSpec((1, K), lambda i, j: (0, 0)),
        pl.BlockSpec((1, K), lambda i, j: (0, 0)),
        pl.BlockSpec((K, tn), lambda i, j: (0, j)),
    ]
    args = [x2d, gamma.reshape(1, K), beta.reshape(1, K), w]
    has_bias = b is not None
    if has_bias:
        in_specs.append(pl.BlockSpec((1, tn), lambda i, j: (0, j)))
        args.append(b.reshape(1, N))

    xb = x2d.dtype.itemsize
    wb = w.dtype.itemsize
    work = (2 * tm * K * xb            # x row block (double-buffered)
            + 4 * K * 4                # gamma / beta
            + 2 * K * tn * wb          # weight columns
            + 2 * tm * tn * xb         # output block
            + tm * K * xb)             # normalized-row scratch
    if has_bias:
        work += 2 * tn * b.dtype.itemsize

    return pl.pallas_call(
        functools.partial(_ln_linear_kernel, has_bias=has_bias,
                          activation=activation, eps=eps),
        out_shape=jax.ShapeDtypeStruct((M, N), x2d.dtype),
        grid=grid,
        in_specs=in_specs,
        out_specs=pl.BlockSpec((tm, tn), lambda i, j: (i, j)),
        scratch_shapes=[pltpu.VMEM((tm, K), x2d.dtype)],  # normalized rows, reused over j
        compiler_params=pltpu.CompilerParams(
            dimension_semantics=("parallel", "arbitrary"),
            vmem_limit_bytes=_vmem_limit(work)),
    )(*args)


# ------------- tiled GEMM with fused bias / activation / residual ------------

def _linear_kernel(x_ref, w_ref, *rest, has_bias, has_res, activation):
    rest = list(rest)
    b_ref = rest.pop(0) if has_bias else None
    r_ref = rest.pop(0) if has_res else None
    o_ref, acc_ref = rest

    k = pl.program_id(2)

    @pl.when(k == 0)
    def _():
        acc_ref[...] = jnp.zeros_like(acc_ref)

    # native-dtype operands into the MXU, f32 accumulation
    acc_ref[...] += jnp.dot(x_ref[...], w_ref[...], preferred_element_type=jnp.float32)

    @pl.when(k == pl.num_programs(2) - 1)
    def _():
        y = acc_ref[...]
        if has_bias:
            y = y + b_ref[...]
        if activation == "gelu":
            y = _gelu(y)
        if has_res:
            y = y + r_ref[...].astype(jnp.float32)
        o_ref[...] = y.astype(o_ref.dtype)


def linear(x2d, w, b=None, residual=None, activation=None, *,
           tm_target=512, tn_target=512, tk_target=512):
    M, K = x2d.shape
    _, N = w.shape
    tm = _tile(M, tm_target, 8)
    tn = _tile(N, tn_target, 128)
    tk = _tile(K, tk_target, 128)
    grid = (M // tm, N // tn, K // tk)

    in_specs = [
        pl.BlockSpec((tm, tk), lambda i, j, k: (i, k)),
        pl.BlockSpec((tk, tn), lambda i, j, k: (k, j)),
    ]
    args = [x2d, w]
    has_bias = b is not None
    if has_bias:
        in_specs.append(pl.BlockSpec((1, tn), lambda i, j, k: (0, j)))
        args.append(b.reshape(1, N))
    has_res = residual is not None
    if has_res:
        in_specs.append(pl.BlockSpec((tm, tn), lambda i, j, k: (i, j)))
        args.append(residual)

    xb = x2d.dtype.itemsize
    wb = w.dtype.itemsize
    work = (2 * tm * tk * xb + 2 * tk * tn * wb + 2 * tm * tn * xb + tm * tn * 4)
    if has_bias:
        work += 2 * tn * b.dtype.itemsize
    if has_res:
        work += 2 * tm * tn * residual.dtype.itemsize

    return pl.pallas_call(
        functools.partial(_linear_kernel, has_bias=has_bias, has_res=has_res,
                          activation=activation),
        out_shape=jax.ShapeDtypeStruct((M, N), x2d.dtype),
        grid=grid,
        in_specs=in_specs,
        out_specs=pl.BlockSpec((tm, tn), lambda i, j, k: (i, j)),
        scratch_shapes=[pltpu.VMEM((tm, tn), jnp.float32)],
        compiler_params=pltpu.CompilerParams(
            dimension_semantics=("parallel", "parallel", "arbitrary"),
            vmem_limit_bytes=_vmem_limit(work)),
    )(*args)


# ----------------- flash (online-softmax) multi-head attention ---------------

def _flash_attn_kernel(q_ref, k_ref, v_ref, o_ref, m_ref, l_ref, acc_ref, *, scale):
    kv = pl.program_id(3)

    @pl.when(kv == 0)
    def _():
        m_ref[...] = jnp.full(m_ref.shape, -jnp.inf, m_ref.dtype)
        l_ref[...] = jnp.zeros_like(l_ref)
        acc_ref[...] = jnp.zeros_like(acc_ref)

    q = q_ref[0, 0] * scale          # native dtype; scale folded into q
    k = k_ref[0, 0]
    v = v_ref[0, 0]

    # (tq, Dh) x (tkv, Dh) contracted on Dh -> (tq, tkv), f32 out of the MXU
    s = jax.lax.dot_general(q, k, (((1,), (1,)), ((), ())),
                            preferred_element_type=jnp.float32)

    m_prev = m_ref[...]
    m_new = jnp.maximum(m_prev, jnp.max(s, axis=-1, keepdims=True))
    alpha = jnp.exp(m_prev - m_new)
    p = jnp.exp(s - m_new)
    l_ref[...] = alpha * l_ref[...] + jnp.sum(p, axis=-1, keepdims=True)
    acc_ref[...] = alpha * acc_ref[...] + jnp.dot(
        p.astype(v.dtype), v, preferred_element_type=jnp.float32)
    m_ref[...] = m_new

    @pl.when(kv == pl.num_programs(3) - 1)
    def _():
        o_ref[0, 0] = (acc_ref[...] / l_ref[...]).astype(o_ref.dtype)


def flash_attention(q, k, v, *, scale, tq_target=128, tkv_target=256):
    # q: (B, H, Lq, Dh); k, v: (B, H, Lk, Dh); out: (B, H, Lq, Dh)
    B, H, Lq, Dh = q.shape
    Bk, Hk, Lk, Dk = k.shape
    assert (B, H, Dh) == (Bk, Hk, Dk), "cross-attention requires matching batch/heads"
    assert v.shape == k.shape

    tq = _tile(Lq, tq_target, 8)
    tkv = _tile(Lk, tkv_target, 8)
    grid = (B, H, Lq // tq, Lk // tkv)

    it = q.dtype.itemsize
    work = (2 * tq * Dh * it            # q block
            + 4 * tkv * Dh * it         # k + v blocks (double-buffered)
            + 2 * tq * Dh * it          # out block
            + 4 * (2 * tq + tq * Dh))   # f32 scratch (m, l, acc)

    return pl.pallas_call(
        functools.partial(_flash_attn_kernel, scale=scale),
        out_shape=jax.ShapeDtypeStruct((B, H, Lq, Dh), q.dtype),
        grid=grid,
        in_specs=[
            pl.BlockSpec((1, 1, tq, Dh), lambda b, h, i, j: (b, h, i, 0)),
            pl.BlockSpec((1, 1, tkv, Dh), lambda b, h, i, j: (b, h, j, 0)),
            pl.BlockSpec((1, 1, tkv, Dh), lambda b, h, i, j: (b, h, j, 0)),
        ],
        out_specs=pl.BlockSpec((1, 1, tq, Dh), lambda b, h, i, j: (b, h, i, 0)),
        scratch_shapes=[
            pltpu.VMEM((tq, 1), jnp.float32),    # running max
            pltpu.VMEM((tq, 1), jnp.float32),    # running sum
            pltpu.VMEM((tq, Dh), jnp.float32),   # output accumulator
        ],
        compiler_params=pltpu.CompilerParams(
            dimension_semantics=("parallel", "parallel", "parallel", "arbitrary"),
            vmem_limit_bytes=_vmem_limit(work)),
    )(q, k, v)


# -------------------------- head split / merge (XLA) -------------------------

def _split_heads(y2d, B, L, H, Dh, n):
    # (B*L, n*H*Dh) -> n tensors of shape (B, H, L, Dh)
    y = y2d.reshape(B, L, n, H, Dh).transpose(2, 0, 3, 1, 4)
    return tuple(y[i] for i in range(n))


def _merge_heads(o_bhld):
    B, H, L, Dh = o_bhld.shape
    return o_bhld.transpose(0, 2, 1, 3).reshape(B * L, H * Dh)


# ----------------------------- params / forward ------------------------------

def init_params(key, num_heads, embed_dim, head_dim, cond_dim):
    inner = num_heads * head_dim
    hidden = 4 * embed_dim
    ks = jax.random.split(key, 7)
    s = 0.02
    return {
        "ln1_g": jnp.ones((embed_dim,), jnp.float32),
        "ln1_b": jnp.zeros((embed_dim,), jnp.float32),
        "ln2_g": jnp.ones((embed_dim,), jnp.float32),
        "ln2_b": jnp.zeros((embed_dim,), jnp.float32),
        "ln3_g": jnp.ones((embed_dim,), jnp.float32),
        "ln3_b": jnp.zeros((embed_dim,), jnp.float32),
        # self-attention
        "sa_wqkv": s * jax.random.normal(ks[0], (embed_dim, 3 * inner), jnp.float32),
        "sa_wo":   s * jax.random.normal(ks[1], (inner, embed_dim), jnp.float32),
        "sa_bo":   jnp.zeros((embed_dim,), jnp.float32),
        # cross-attention (K and V projections fused into one weight)
        "ca_wq":  s * jax.random.normal(ks[2], (embed_dim, inner), jnp.float32),
        "ca_wkv": s * jax.random.normal(ks[3], (cond_dim, 2 * inner), jnp.float32),
        "ca_wo":  s * jax.random.normal(ks[4], (inner, embed_dim), jnp.float32),
        "ca_bo":  jnp.zeros((embed_dim,), jnp.float32),
        # feed-forward
        "ff_w1": s * jax.random.normal(ks[5], (embed_dim, hidden), jnp.float32),
        "ff_b1": jnp.zeros((hidden,), jnp.float32),
        "ff_w2": s * jax.random.normal(ks[6], (hidden, embed_dim), jnp.float32),
        "ff_b2": jnp.zeros((embed_dim,), jnp.float32),
    }


def transformer_decoder_layer(params, x, c, *, num_heads, head_dim):
    B, L, E = x.shape
    Bc, Lc, C = c.shape
    assert Bc == B, "conditioning batch must match input batch"
    H, Dh = num_heads, head_dim
    inner = H * Dh
    scale = float(Dh) ** -0.5

    x2d = x.reshape(B * L, E)
    c2d = c.reshape(Bc * Lc, C)

    # ---- h = mhsa(norm1(x)) + x   (LN fused into QKV GEMM, residual into out-proj) ----
    qkv = ln_linear(x2d, params["ln1_g"], params["ln1_b"], params["sa_wqkv"])
    q, k, v = _split_heads(qkv, B, L, H, Dh, 3)
    sa = _merge_heads(flash_attention(q, k, v, scale=scale))
    y = linear(sa, params["sa_wo"], b=params["sa_bo"], residual=x2d)

    # ---- h = mhca(norm2(h), c) + y   (fused KV projection on c) ----
    q2d = ln_linear(y, params["ln2_g"], params["ln2_b"], params["ca_wq"])
    (q,) = _split_heads(q2d, B, L, H, Dh, 1)
    kv2d = linear(c2d, params["ca_wkv"])
    k, v = _split_heads(kv2d, Bc, Lc, H, Dh, 2)
    ca = _merge_heads(flash_attention(q, k, v, scale=scale))
    z = linear(ca, params["ca_wo"], b=params["ca_bo"], residual=y)

    # ---- h = ffn(norm3(h)) + z ----
    f = ln_linear(z, params["ln3_g"], params["ln3_b"], params["ff_w1"],
                  b=params["ff_b1"], activation="gelu")
    h = linear(f, params["ff_w2"], b=params["ff_b2"], residual=z)

    return h.reshape(B, L, E)


# --------------------------------- main --------------------------------------

if __name__ == "__main__":
    num_heads, embed_dim, head_dim, cond_dim = 2, 32, 16, 24
    B, L, Lc = 2, 8, 8

    key = jax.random.PRNGKey(0)
    kx, kc, kp = jax.random.split(key, 3)
    x = jax.random.normal(kx, (B, L, embed_dim), jnp.float32)
    c = jax.random.normal(kc, (B, Lc, cond_dim), jnp.float32)
    params = init_params(kp, num_heads, embed_dim, head_dim, cond_dim)

    fwd = jax.jit(functools.partial(
        transformer_decoder_layer, num_heads=num_heads, head_dim=head_dim))
    out = fwd(params, x, c)
    jax.block_until_ready(out)
    assert out.shape == (B, L, embed_dim) and out.dtype == jnp.float32
    assert bool(jnp.all(jnp.isfinite(out)))
    print("KERNEL_OK")
</pallas_src>

<mosaic_0001>
module attributes {stable_mosaic.version = 11 : i64} {
  func.func @_ln_linear_kernel(%arg0: i32, %arg1: i32, %arg2: memref<16x32xf32, #tpu.memory_space<vmem>>, %arg3: memref<1x32xf32, #tpu.memory_space<vmem>>, %arg4: memref<1x32xf32, #tpu.memory_space<vmem>>, %arg5: memref<32x96xf32, #tpu.memory_space<vmem>>, %arg6: memref<16x96xf32, #tpu.memory_space<vmem>>, %arg7: memref<16x32xf32, #tpu.memory_space<vmem>>) attributes {dimension_semantics = [#tpu.dimension_semantics<parallel>, #tpu.dimension_semantics<arbitrary>], iteration_bounds = array<i64: 1, 1>, scalar_prefetch = 0 : i64, scratch_operands = 1 : i64, tpu.core_type = #tpu.core_type<tc>, window_params = [{transform_indices = @transform_0, window_bounds = array<i64: 16, 32>}, {pipeline_mode = #tpu.pipeline_mode<synchronous>, transform_indices = @transform_1, window_bounds = array<i64: 1, 32>}, {pipeline_mode = #tpu.pipeline_mode<synchronous>, transform_indices = @transform_2, window_bounds = array<i64: 1, 32>}, {transform_indices = @transform_3, window_bounds = array<i64: 32, 96>}, {transform_indices = @transform_4, window_bounds = array<i64: 16, 96>}]} {
    %c0_i32 = arith.constant 0 : i32
    %0 = arith.cmpi eq, %arg1, %c0_i32 : i32
    %1 = arith.extui %0 : i1 to i32
    %c0_i32_0 = arith.constant 0 : i32
    %2 = arith.cmpi ne, %1, %c0_i32_0 : i32
    scf.if %2 {
      %c0_6 = arith.constant 0 : index
      %c0_7 = arith.constant 0 : index
      %7 = vector.load %arg2[%c0_6, %c0_7] : memref<16x32xf32, #tpu.memory_space<vmem>>, vector<16x32xf32>
      %cst_8 = arith.constant dense<0.000000e+00> : vector<16xf32>
      %8 = vector.multi_reduction <add>, %7, %cst_8 [1] : vector<16x32xf32> to vector<16xf32>
      %9 = vector.shape_cast %8 : vector<16xf32> to vector<16x1xf32>
      %cst_9 = arith.constant 3.200000e+01 : f32
      %10 = vector.broadcast %cst_9 : f32 to vector<16x1xf32>
      %11 = arith.divf %9, %10 : vector<16x1xf32>
      %12 = vector.broadcast %11 : vector<16x1xf32> to vector<16x32xf32>
      %13 = arith.subf %7, %12 : vector<16x32xf32>
      %14 = arith.mulf %13, %13 : vector<16x32xf32>
      %cst_10 = arith.constant dense<0.000000e+00> : vector<16xf32>
      %15 = vector.multi_reduction <add>, %14, %cst_10 [1] : vector<16x32xf32> to vector<16xf32>
      %16 = vector.shape_cast %15 : vector<16xf32> to vector<16x1xf32>
      %cst_11 = arith.constant 3.200000e+01 : f32
      %17 = vector.broadcast %cst_11 : f32 to vector<16x1xf32>
      %18 = arith.divf %16, %17 : vector<16x1xf32>
      %19 = vector.broadcast %11 : vector<16x1xf32> to vector<16x32xf32>
      %20 = arith.subf %7, %19 : vector<16x32xf32>
      %cst_12 = arith.constant 9.99999974E-6 : f32
      %21 = vector.broadcast %cst_12 : f32 to vector<16x1xf32>
      %22 = arith.addf %18, %21 : vector<16x1xf32>
      %23 = math.rsqrt %22 : vector<16x1xf32>
      %24 = vector.broadcast %23 : vector<16x1xf32> to vector<16x32xf32>
      %25 = arith.mulf %20, %24 : vector<16x32xf32>
      %c0_13 = arith.constant 0 : index
      %c0_14 = arith.constant 0 : index
      %26 = vector.load %arg3[%c0_13, %c0_14] : memref<1x32xf32, #tpu.memory_space<vmem>>, vector<1x32xf32>
      %27 = vector.broadcast %26 : vector<1x32xf32> to vector<16x32xf32>
      %28 = arith.mulf %25, %27 : vector<16x32xf32>
      %c0_15 = arith.constant 0 : index
      %c0_16 = arith.constant 0 : index
      %29 = vector.load %arg4[%c0_15, %c0_16] : memref<1x32xf32, #tpu.memory_space<vmem>>, vector<1x32xf32>
      %30 = vector.broadcast %29 : vector<1x32xf32> to vector<16x32xf32>
      %31 = arith.addf %28, %30 : vector<16x32xf32>
      %c0_17 = arith.constant 0 : index
      %c0_18 = arith.constant 0 : index
      %32 = vector.load %arg7[%c0_17, %c0_18] : memref<16x32xf32, #tpu.memory_space<vmem>>, vector<16x32xf32>
      tpu.vector_store %arg7[%c0_17, %c0_18], %31 {strides = array<i32>} : memref<16x32xf32, #tpu.memory_space<vmem>>, vector<16x32xf32>,
    } else {
    }
    %c0 = arith.constant 0 : index
    %c0_1 = arith.constant 0 : index
    %3 = vector.load %arg7[%c0, %c0_1] : memref<16x32xf32, #tpu.memory_space<vmem>>, vector<16x32xf32>
    %c0_2 = arith.constant 0 : index
    %c0_3 = arith.constant 0 : index
    %4 = vector.load %arg5[%c0_2, %c0_3] : memref<32x96xf32, #tpu.memory_space<vmem>>, vector<32x96xf32>
    %cst = arith.constant dense<0.000000e+00> : vector<16x96xf32>
    %5 = tpu.matmul %3, %4, %cst {dimension_numbers = #tpu.dot_dimension_numbers<[1], [0], [0], [1], [0, 0, 1, 1], [], []>} : vector<16x32xf32>, vector<32x96xf32>, vector<16x96xf32> -> vector<16x96xf32>
    %c0_4 = arith.constant 0 : index
    %c0_5 = arith.constant 0 : index
    %6 = vector.load %arg6[%c0_4, %c0_5] : memref<16x96xf32, #tpu.memory_space<vmem>>, vector<16x96xf32>
    tpu.vector_store %arg6[%c0_4, %c0_5], %5 {strides = array<i32>} : memref<16x96xf32, #tpu.memory_space<vmem>>, vector<16x96xf32>,
    return
  }
  func.func @transform_0(%arg0: i32, %arg1: i32) -> (i32, i32) {
    %c0_i32 = arith.constant 0 : i32
    %c0_i32_0 = arith.constant 0 : i32
    return %arg0, %c0_i32 : i32, i32
  }
  func.func @transform_1(%arg0: i32, %arg1: i32) -> (i32, i32) {
    %c0_i32 = arith.constant 0 : i32
    %c0_i32_0 = arith.constant 0 : i32
    %c0_i32_1 = arith.constant 0 : i32
    return %c0_i32, %c0_i32_0 : i32, i32
  }
  func.func @transform_2(%arg0: i32, %arg1: i32) -> (i32, i32) {
    %c0_i32 = arith.constant 0 : i32
    %c0_i32_0 = arith.constant 0 : i32
    %c0_i32_1 = arith.constant 0 : i32
    return %c0_i32, %c0_i32_0 : i32, i32
  }
  func.func @transform_3(%arg0: i32, %arg1: i32) -> (i32, i32) {
    %c0_i32 = arith.constant 0 : i32
    %c0_i32_0 = arith.constant 0 : i32
    return %c0_i32, %arg1 : i32, i32
  }
  func.func @transform_4(%arg0: i32, %arg1: i32) -> (i32, i32) {
    %c0_i32 = arith.constant 0 : i32
    return %arg0, %arg1 : i32, i32
  }
}

module attributes {stable_mosaic.version = 11 : i64} {
  func.func @_linear_kernel(%arg0: i32, %arg1: i32, %arg2: i32, %arg3: memref<16x32xf32, #tpu.memory_space<vmem>>, %arg4: memref<32x32xf32, #tpu.memory_space<vmem>>, %arg5: memref<1x32xf32, #tpu.memory_space<vmem>>, %arg6: memref<16x32xf32, #tpu.memory_space<vmem>>, %arg7: memref<16x32xf32, #tpu.memory_space<vmem>>, %arg8: memref<16x32xf32, #tpu.memory_space<vmem>>) attributes {dimension_semantics = [#tpu.dimension_semantics<parallel>, #tpu.dimension_semantics<parallel>, #tpu.dimension_semantics<arbitrary>], iteration_bounds = array<i64: 1, 1, 1>, scalar_prefetch = 0 : i64, scratch_operands = 1 : i64, tpu.core_type = #tpu.core_type<tc>, window_params = [{transform_indices = @transform_0, window_bounds = array<i64: 16, 32>}, {transform_indices = @transform_1, window_bounds = array<i64: 32, 32>}, {transform_indices = @transform_2, window_bounds = array<i64: 1, 32>}, {transform_indices = @transform_3, window_bounds = array<i64: 16, 32>}, {transform_indices = @transform_4, window_bounds = array<i64: 16, 32>}]} {
    %c0_i32 = arith.constant 0 : i32
    %0 = arith.cmpi eq, %arg2, %c0_i32 : i32
    %1 = arith.extui %0 : i1 to i32
    %c0_i32_0 = arith.constant 0 : i32
    %2 = arith.cmpi ne, %1, %c0_i32_0 : i32
    scf.if %2 {
      %cst_10 = arith.constant 0.000000e+00 : f32
      %12 = vector.broadcast %cst_10 : f32 to vector<16x32xf32>
      %c0_11 = arith.constant 0 : index
      %c0_12 = arith.constant 0 : index
      %13 = vector.load %arg8[%c0_11, %c0_12] : memref<16x32xf32, #tpu.memory_space<vmem>>, vector<16x32xf32>
      tpu.vector_store %arg8[%c0_11, %c0_12], %12 {strides = array<i32>} : memref<16x32xf32, #tpu.memory_space<vmem>>, vector<16x32xf32>,
    } else {
    }
    %c0 = arith.constant 0 : index
    %c0_1 = arith.constant 0 : index
    %3 = vector.load %arg8[%c0, %c0_1] : memref<16x32xf32, #tpu.memory_space<vmem>>, vector<16x32xf32>
    %c0_2 = arith.constant 0 : index
    %c0_3 = arith.constant 0 : index
    %4 = vector.load %arg3[%c0_2, %c0_3] : memref<16x32xf32, #tpu.memory_space<vmem>>, vector<16x32xf32>
    %c0_4 = arith.constant 0 : index
    %c0_5 = arith.constant 0 : index
    %5 = vector.load %arg4[%c0_4, %c0_5] : memref<32x32xf32, #tpu.memory_space<vmem>>, vector<32x32xf32>
    %cst = arith.constant dense<0.000000e+00> : vector<16x32xf32>
    %6 = tpu.matmul %4, %5, %cst {dimension_numbers = #tpu.dot_dimension_numbers<[1], [0], [0], [1], [0, 0, 1, 1], [], []>} : vector<16x32xf32>, vector<32x32xf32>, vector<16x32xf32> -> vector<16x32xf32>
    %7 = arith.addf %3, %6 : vector<16x32xf32>
    %c0_6 = arith.constant 0 : index
    %c0_7 = arith.constant 0 : index
    %8 = vector.load %arg8[%c0_6, %c0_7] : memref<16x32xf32, #tpu.memory_space<vmem>>, vector<16x32xf32>
    tpu.vector_store %arg8[%c0_6, %c0_7], %7 {strides = array<i32>} : memref<16x32xf32, #tpu.memory_space<vmem>>, vector<16x32xf32>,
    %c0_i32_8 = arith.constant 0 : i32
    %9 = arith.cmpi eq, %arg2, %c0_i32_8 : i32
    %10 = arith.extui %9 : i1 to i32
    %c0_i32_9 = arith.constant 0 : i32
    %11 = arith.cmpi ne, %10, %c0_i32_9 : i32
    scf.if %11 {
      %c0_10 = arith.constant 0 : index
      %c0_11 = arith.constant 0 : index
      %12 = vector.load %arg8[%c0_10, %c0_11] : memref<16x32xf32, #tpu.memory_space<vmem>>, vector<16x32xf32>
      %c0_12 = arith.constant 0 : index
      %c0_13 = arith.constant 0 : index
      %13 = vector.load %arg5[%c0_12, %c0_13] : memref<1x32xf32, #tpu.memory_space<vmem>>, vector<1x32xf32>
      %14 = vector.broadcast %13 : vector<1x32xf32> to vector<16x32xf32>
      %15 = arith.addf %12, %14 : vector<16x32xf32>
      %c0_14 = arith.constant 0 : index
      %c0_15 = arith.constant 0 : index
      %16 = vector.load %arg6[%c0_14, %c0_15] : memref<16x32xf32, #tpu.memory_space<vmem>>, vector<16x32xf32>
      %17 = arith.addf %15, %16 : vector<16x32xf32>
      %c0_16 = arith.constant 0 : index
      %c0_17 = arith.constant 0 : index
      %18 = vector.load %arg7[%c0_16, %c0_17] : memref<16x32xf32, #tpu.memory_space<vmem>>, vector<16x32xf32>
      tpu.vector_store %arg7[%c0_16, %c0_17], %17 {strides = array<i32>} : memref<16x32xf32, #tpu.memory_space<vmem>>, vector<16x32xf32>,
    } else {
    }
    return
  }
  func.func @transform_0(%arg0: i32, %arg1: i32, %arg2: i32) -> (i32, i32) {
    %c0_i32 = arith.constant 0 : i32
    return %arg0, %arg2 : i32, i32
  }
  func.func @transform_1(%arg0: i32, %arg1: i32, %arg2: i32) -> (i32, i32) {
    %c0_i32 = arith.constant 0 : i32
    return %arg2, %arg1 : i32, i32
  }
  func.func @transform_2(%arg0: i32, %arg1: i32, %arg2: i32) -> (i32, i32) {
    %c0_i32 = arith.constant 0 : i32
    %c0_i32_0 = arith.constant 0 : i32
    return %c0_i32, %arg1 : i32, i32
  }
  func.func @transform_3(%arg0: i32, %arg1: i32, %arg2: i32) -> (i32, i32) {
    %c0_i32 = arith.constant 0 : i32
    return %arg0, %arg1 : i32, i32
  }
  func.func @transform_4(%arg0: i32, %arg1: i32, %arg2: i32) -> (i32, i32) {
    %c0_i32 = arith.constant 0 : i32
    return %arg0, %arg1 : i32, i32
  }
}

module attributes {stable_mosaic.version = 11 : i64} {
  func.func @_flash_attn_kernel(%arg0: i32, %arg1: i32, %arg2: i32, %arg3: i32, %arg4: memref<1x1x8x16xf32, #tpu.memory_space<vmem>>, %arg5: memref<1x1x8x16xf32, #tpu.memory_space<vmem>>, %arg6: memref<1x1x8x16xf32, #tpu.memory_space<vmem>>, %arg7: memref<1x1x8x16xf32, #tpu.memory_space<vmem>>, %arg8: memref<8x1xf32, #tpu.memory_space<vmem>>, %arg9: memref<8x1xf32, #tpu.memory_space<vmem>>, %arg10: memref<8x16xf32, #tpu.memory_space<vmem>>) attributes {dimension_semantics = [#tpu.dimension_semantics<parallel>, #tpu.dimension_semantics<parallel>, #tpu.dimension_semantics<parallel>, #tpu.dimension_semantics<arbitrary>], iteration_bounds = array<i64: 2, 2, 1, 1>, scalar_prefetch = 0 : i64, scratch_operands = 3 : i64, tpu.core_type = #tpu.core_type<tc>, window_params = [{transform_indices = @transform_0, window_bounds = array<i64: 1, 1, 8, 16>}, {transform_indices = @transform_1, window_bounds = array<i64: 1, 1, 8, 16>}, {transform_indices = @transform_2, window_bounds = array<i64: 1, 1, 8, 16>}, {transform_indices = @transform_3, window_bounds = array<i64: 1, 1, 8, 16>}]} {
    %c0_i32 = arith.constant 0 : i32
    %0 = arith.cmpi eq, %arg3, %c0_i32 : i32
    %1 = arith.extui %0 : i1 to i32
    %c0_i32_0 = arith.constant 0 : i32
    %2 = arith.cmpi ne, %1, %c0_i32_0 : i32
    scf.if %2 {
      %cst_30 = arith.constant 0xFF800000 : f32
      %37 = vector.broadcast %cst_30 : f32 to vector<8x1xf32>
      %c0_31 = arith.constant 0 : index
      %c0_32 = arith.constant 0 : index
      %38 = vector.load %arg8[%c0_31, %c0_32] : memref<8x1xf32, #tpu.memory_space<vmem>>, vector<8x1xf32>
      tpu.vector_store %arg8[%c0_31, %c0_32], %37 {strides = array<i32>} : memref<8x1xf32, #tpu.memory_space<vmem>>, vector<8x1xf32>,
      %cst_33 = arith.constant 0.000000e+00 : f32
      %39 = vector.broadcast %cst_33 : f32 to vector<8x1xf32>
      %c0_34 = arith.constant 0 : index
      %c0_35 = arith.constant 0 : index
      %40 = vector.load %arg9[%c0_34, %c0_35] : memref<8x1xf32, #tpu.memory_space<vmem>>, vector<8x1xf32>
      tpu.vector_store %arg9[%c0_34, %c0_35], %39 {strides = array<i32>} : memref<8x1xf32, #tpu.memory_space<vmem>>, vector<8x1xf32>,
      %cst_36 = arith.constant 0.000000e+00 : f32
      %41 = vector.broadcast %cst_36 : f32 to vector<8x16xf32>
      %c0_37 = arith.constant 0 : index
      %c0_38 = arith.constant 0 : index
      %42 = vector.load %arg10[%c0_37, %c0_38] : memref<8x16xf32, #tpu.memory_space<vmem>>, vector<8x16xf32>
      tpu.vector_store %arg10[%c0_37, %c0_38], %41 {strides = array<i32>} : memref<8x16xf32, #tpu.memory_space<vmem>>, vector<8x16xf32>,
    } else {
    }
    %c0 = arith.constant 0 : index
    %c0_1 = arith.constant 0 : index
    %c0_2 = arith.constant 0 : index
    %c0_3 = arith.constant 0 : index
    %3 = vector.load %arg4[%c0, %c0_1, %c0_2, %c0_3] : memref<1x1x8x16xf32, #tpu.memory_space<vmem>>, vector<1x1x8x16xf32>
    %4 = vector.shape_cast %3 : vector<1x1x8x16xf32> to vector<8x16xf32>
    %cst = arith.constant 2.500000e-01 : f32
    %5 = vector.broadcast %cst : f32 to vector<8x16xf32>
    %6 = arith.mulf %4, %5 : vector<8x16xf32>
    %c0_4 = arith.constant 0 : index
    %c0_5 = arith.constant 0 : index
    %c0_6 = arith.constant 0 : index
    %c0_7 = arith.constant 0 : index
    %7 = vector.load %arg5[%c0_4, %c0_5, %c0_6, %c0_7] : memref<1x1x8x16xf32, #tpu.memory_space<vmem>>, vector<1x1x8x16xf32>
    %8 = vector.shape_cast %7 : vector<1x1x8x16xf32> to vector<8x16xf32>
    %c0_8 = arith.constant 0 : index
    %c0_9 = arith.constant 0 : index
    %c0_10 = arith.constant 0 : index
    %c0_11 = arith.constant 0 : index
    %9 = vector.load %arg6[%c0_8, %c0_9, %c0_10, %c0_11] : memref<1x1x8x16xf32, #tpu.memory_space<vmem>>, vector<1x1x8x16xf32>
    %10 = vector.shape_cast %9 : vector<1x1x8x16xf32> to vector<8x16xf32>
    %cst_12 = arith.constant dense<0.000000e+00> : vector<8x8xf32>
    %11 = tpu.matmul %6, %8, %cst_12 {dimension_numbers = #tpu.dot_dimension_numbers<[1], [1], [0], [0], [0, 0, 1, 0], [], []>} : vector<8x16xf32>, vector<8x16xf32>, vector<8x8xf32> -> vector<8x8xf32>
    %c0_13 = arith.constant 0 : index
    %c0_14 = arith.constant 0 : index
    %12 = vector.load %arg8[%c0_13, %c0_14] : memref<8x1xf32, #tpu.memory_space<vmem>>, vector<8x1xf32>
    %cst_15 = arith.constant dense<0xFF800000> : vector<8xf32>
    %13 = vector.multi_reduction <maximumf>, %11, %cst_15 [1] : vector<8x8xf32> to vector<8xf32>
    %14 = vector.shape_cast %13 : vector<8xf32> to vector<8x1xf32>
    %15 = arith.maximumf %12, %14 : vector<8x1xf32>
    %16 = arith.subf %12, %15 : vector<8x1xf32>
    %17 = math.exp %16 : vector<8x1xf32>
    %18 = vector.broadcast %15 : vector<8x1xf32> to vector<8x8xf32>
    %19 = arith.subf %11, %18 : vector<8x8xf32>
    %20 = math.exp %19 : vector<8x8xf32>
    %c0_16 = arith.constant 0 : index
    %c0_17 = arith.constant 0 : index
    %21 = vector.load %arg9[%c0_16, %c0_17] : memref<8x1xf32, #tpu.memory_space<vmem>>, vector<8x1xf32>
    %22 = arith.mulf %17, %21 : vector<8x1xf32>
    %cst_18 = arith.constant dense<0.000000e+00> : vector<8xf32>
    %23 = vector.multi_reduction <add>, %20, %cst_18 [1] : vector<8x8xf32> to vector<8xf32>
    %24 = vector.shape_cast %23 : vector<8xf32> to vector<8x1xf32>
    %25 = arith.addf %22, %24 : vector<8x1xf32>
    %c0_19 = arith.constant 0 : index
    %c0_20 = arith.constant 0 : index
    %26 = vector.load %arg9[%c0_19, %c0_20] : memref<8x1xf32, #tpu.memory_space<vmem>>, vector<8x1xf32>
    tpu.vector_store %arg9[%c0_19, %c0_20], %25 {strides = array<i32>} : memref<8x1xf32, #tpu.memory_space<vmem>>, vector<8x1xf32>,
    %c0_21 = arith.constant 0 : index
    %c0_22 = arith.constant 0 : index
    %27 = vector.load %arg10[%c0_21, %c0_22] : memref<8x16xf32, #tpu.memory_space<vmem>>, vector<8x16xf32>
    %28 = vector.broadcast %17 : vector<8x1xf32> to vector<8x16xf32>
    %29 = arith.mulf %28, %27 : vector<8x16xf32>
    %cst_23 = arith.constant dense<0.000000e+00> : vector<8x16xf32>
    %30 = tpu.matmul %20, %10, %cst_23 {dimension_numbers = #tpu.dot_dimension_numbers<[1], [0], [0], [1], [0, 0, 1, 1], [], []>} : vector<8x8xf32>, vector<8x16xf32>, vector<8x16xf32> -> vector<8x16xf32>
    %31 = arith.addf %29, %30 : vector<8x16xf32>
    %c0_24 = arith.constant 0 : index
    %c0_25 = arith.constant 0 : index
    %32 = vector.load %arg10[%c0_24, %c0_25] : memref<8x16xf32, #tpu.memory_space<vmem>>, vector<8x16xf32>
    tpu.vector_store %arg10[%c0_24, %c0_25], %31 {strides = array<i32>} : memref<8x16xf32, #tpu.memory_space<vmem>>, vector<8x16xf32>,
    %c0_26 = arith.constant 0 : index
    %c0_27 = arith.constant 0 : index
    %33 = vector.load %arg8[%c0_26, %c0_27] : memref<8x1xf32, #tpu.memory_space<vmem>>, vector<8x1xf32>
    tpu.vector_store %arg8[%c0_26, %c0_27], %15 {strides = array<i32>} : memref<8x1xf32, #tpu.memory_space<vmem>>, vector<8x1xf32>,
    %c0_i32_28 = arith.constant 0 : i32
    %34 = arith.cmpi eq, %arg3, %c0_i32_28 : i32
    %35 = arith.extui %34 : i1 to i32
    %c0_i32_29 = arith.constant 0 : i32
    %36 = arith.cmpi ne, %35, %c0_i32_29 : i32
    scf.if %36 {
      %c0_30 = arith.constant 0 : index
      %c0_31 = arith.constant 0 : index
      %37 = vector.load %arg10[%c0_30, %c0_31] : memref<8x16xf32, #tpu.memory_space<vmem>>, vector<8x16xf32>
      %c0_32 = arith.constant 0 : index
      %c0_33 = arith.constant 0 : index
      %38 = vector.load %arg9[%c0_32, %c0_33] : memref<8x1xf32, #tpu.memory_space<vmem>>, vector<8x1xf32>
      %39 = vector.broadcast %38 : vector<8x1xf32> to vector<8x16xf32>
      %40 = arith.divf %37, %39 : vector<8x16xf32>
      %c0_34 = arith.constant 0 : index
      %c0_35 = arith.constant 0 : index
      %c0_36 = arith.constant 0 : index
      %c0_37 = arith.constant 0 : index
      %41 = vector.load %arg7[%c0_34, %c0_35, %c0_36, %c0_37] : memref<1x1x8x16xf32, #tpu.memory_space<vmem>>, vector<1x1x8x16xf32>
      %42 = vector.shape_cast %41 : vector<1x1x8x16xf32> to vector<8x16xf32>
      %43 = vector.shape_cast %40 : vector<8x16xf32> to vector<1x1x8x16xf32>
      tpu.vector_store %arg7[%c0_34, %c0_35, %c0_36, %c0_37], %43 {strides = array<i32>} : memref<1x1x8x16xf32, #tpu.memory_space<vmem>>, vector<1x1x8x16xf32>,
    } else {
    }
    return
  }
  func.func @transform_0(%arg0: i32, %arg1: i32, %arg2: i32, %arg3: i32) -> (i32, i32, i32, i32) {
    %c0_i32 = arith.constant 0 : i32
    %c0_i32_0 = arith.constant 0 : i32
    return %arg0, %arg1, %arg2, %c0_i32 : i32, i32, i32, i32
  }
  func.func @transform_1(%arg0: i32, %arg1: i32, %arg2: i32, %arg3: i32) -> (i32, i32, i32, i32) {
    %c0_i32 = arith.constant 0 : i32
    %c0_i32_0 = arith.constant 0 : i32
    return %arg0, %arg1, %arg3, %c0_i32 : i32, i32, i32, i32
  }
  func.func @transform_2(%arg0: i32, %arg1: i32, %arg2: i32, %arg3: i32) -> (i32, i32, i32, i32) {
    %c0_i32 = arith.constant 0 : i32
    %c0_i32_0 = arith.constant 0 : i32
    return %arg0, %arg1, %arg3, %c0_i32 : i32, i32, i32, i32
  }
  func.func @transform_3(%arg0: i32, %arg1: i32, %arg2: i32, %arg3: i32) -> (i32, i32, i32, i32) {
    %c0_i32 = arith.constant 0 : i32
    %c0_i32_0 = arith.constant 0 : i32
    return %arg0, %arg1, %arg2, %c0_i32 : i32, i32, i32, i32
  }
}

module attributes {stable_mosaic.version = 11 : i64} {
  func.func @_ln_linear_kernel(%arg0: i32, %arg1: i32, %arg2: memref<16x32xf32, #tpu.memory_space<vmem>>, %arg3: memref<1x32xf32, #tpu.memory_space<vmem>>, %arg4: memref<1x32xf32, #tpu.memory_space<vmem>>, %arg5: memref<32x32xf32, #tpu.memory_space<vmem>>, %arg6: memref<16x32xf32, #tpu.memory_space<vmem>>, %arg7: memref<16x32xf32, #tpu.memory_space<vmem>>) attributes {dimension_semantics = [#tpu.dimension_semantics<parallel>, #tpu.dimension_semantics<arbitrary>], iteration_bounds = array<i64: 1, 1>, scalar_prefetch = 0 : i64, scratch_operands = 1 : i64, tpu.core_type = #tpu.core_type<tc>, window_params = [{transform_indices = @transform_0, window_bounds = array<i64: 16, 32>}, {pipeline_mode = #tpu.pipeline_mode<synchronous>, transform_indices = @transform_1, window_bounds = array<i64: 1, 32>}, {pipeline_mode = #tpu.pipeline_mode<synchronous>, transform_indices = @transform_2, window_bounds = array<i64: 1, 32>}, {transform_indices = @transform_3, window_bounds = array<i64: 32, 32>}, {transform_indices = @transform_4, window_bounds = array<i64: 16, 32>}]} {
    %c0_i32 = arith.constant 0 : i32
    %0 = arith.cmpi eq, %arg1, %c0_i32 : i32
    %1 = arith.extui %0 : i1 to i32
    %c0_i32_0 = arith.constant 0 : i32
    %2 = arith.cmpi ne, %1, %c0_i32_0 : i32
    scf.if %2 {
      %c0_6 = arith.constant 0 : index
      %c0_7 = arith.constant 0 : index
      %7 = vector.load %arg2[%c0_6, %c0_7] : memref<16x32xf32, #tpu.memory_space<vmem>>, vector<16x32xf32>
      %cst_8 = arith.constant dense<0.000000e+00> : vector<16xf32>
      %8 = vector.multi_reduction <add>, %7, %cst_8 [1] : vector<16x32xf32> to vector<16xf32>
      %9 = vector.shape_cast %8 : vector<16xf32> to vector<16x1xf32>
      %cst_9 = arith.constant 3.200000e+01 : f32
      %10 = vector.broadcast %cst_9 : f32 to vector<16x1xf32>
      %11 = arith.divf %9, %10 : vector<16x1xf32>
      %12 = vector.broadcast %11 : vector<16x1xf32> to vector<16x32xf32>
      %13 = arith.subf %7, %12 : vector<16x32xf32>
      %14 = arith.mulf %13, %13 : vector<16x32xf32>
      %cst_10 = arith.constant dense<0.000000e+00> : vector<16xf32>
      %15 = vector.multi_reduction <add>, %14, %cst_10 [1] : vector<16x32xf32> to vector<16xf32>
      %16 = vector.shape_cast %15 : vector<16xf32> to vector<16x1xf32>
      %cst_11 = arith.constant 3.200000e+01 : f32
      %17 = vector.broadcast %cst_11 : f32 to vector<16x1xf32>
      %18 = arith.divf %16, %17 : vector<16x1xf32>
      %19 = vector.broadcast %11 : vector<16x1xf32> to vector<16x32xf32>
      %20 = arith.subf %7, %19 : vector<16x32xf32>
      %cst_12 = arith.constant 9.99999974E-6 : f32
      %21 = vector.broadcast %cst_12 : f32 to vector<16x1xf32>
      %22 = arith.addf %18, %21 : vector<16x1xf32>
      %23 = math.rsqrt %22 : vector<16x1xf32>
      %24 = vector.broadcast %23 : vector<16x1xf32> to vector<16x32xf32>
      %25 = arith.mulf %20, %24 : vector<16x32xf32>
      %c0_13 = arith.constant 0 : index
      %c0_14 = arith.constant 0 : index
      %26 = vector.load %arg3[%c0_13, %c0_14] : memref<1x32xf32, #tpu.memory_space<vmem>>, vector<1x32xf32>
      %27 = vector.broadcast %26 : vector<1x32xf32> to vector<16x32xf32>
      %28 = arith.mulf %25, %27 : vector<16x32xf32>
      %c0_15 = arith.constant 0 : index
      %c0_16 = arith.constant 0 : index
      %29 = vector.load %arg4[%c0_15, %c0_16] : memref<1x32xf32, #tpu.memory_space<vmem>>, vector<1x32xf32>
      %30 = vector.broadcast %29 : vector<1x32xf32> to vector<16x32xf32>
      %31 = arith.addf %28, %30 : vector<16x32xf32>
      %c0_17 = arith.constant 0 : index
      %c0_18 = arith.constant 0 : index
      %32 = vector.load %arg7[%c0_17, %c0_18] : memref<16x32xf32, #tpu.memory_space<vmem>>, vector<16x32xf32>
      tpu.vector_store %arg7[%c0_17, %c0_18], %31 {strides = array<i32>} : memref<16x32xf32, #tpu.memory_space<vmem>>, vector<16x32xf32>,
    } else {
    }
    %c0 = arith.constant 0 : index
    %c0_1 = arith.constant 0 : index
    %3 = vector.load %arg7[%c0, %c0_1] : memref<16x32xf32, #tpu.memory_space<vmem>>, vector<16x32xf32>
    %c0_2 = arith.constant 0 : index
    %c0_3 = arith.constant 0 : index
    %4 = vector.load %arg5[%c0_2, %c0_3] : memref<32x32xf32, #tpu.memory_space<vmem>>, vector<32x32xf32>
    %cst = arith.constant dense<0.000000e+00> : vector<16x32xf32>
    %5 = tpu.matmul %3, %4, %cst {dimension_numbers = #tpu.dot_dimension_numbers<[1], [0], [0], [1], [0, 0, 1, 1], [], []>} : vector<16x32xf32>, vector<32x32xf32>, vector<16x32xf32> -> vector<16x32xf32>
    %c0_4 = arith.constant 0 : index
    %c0_5 = arith.constant 0 : index
    %6 = vector.load %arg6[%c0_4, %c0_5] : memref<16x32xf32, #tpu.memory_space<vmem>>, vector<16x32xf32>
    tpu.vector_store %arg6[%c0_4, %c0_5], %5 {strides = array<i32>} : memref<16x32xf32, #tpu.memory_space<vmem>>, vector<16x32xf32>,
    return
  }
  func.func @transform_0(%arg0: i32, %arg1: i32) -> (i32, i32) {
    %c0_i32 = arith.constant 0 : i32
    %c0_i32_0 = arith.constant 0 : i32
    return %arg0, %c0_i32 : i32, i32
  }
  func.func @transform_1(%arg0: i32, %arg1: i32) -> (i32, i32) {
    %c0_i32 = arith.constant 0 : i32
    %c0_i32_0 = arith.constant 0 : i32
    %c0_i32_1 = arith.constant 0 : i32
    return %c0_i32, %c0_i32_0 : i32, i32
  }
  func.func @transform_2(%arg0: i32, %arg1: i32) -> (i32, i32) {
    %c0_i32 = arith.constant 0 : i32
    %c0_i32_0 = arith.constant 0 : i32
    %c0_i32_1 = arith.constant 0 : i32
    return %c0_i32, %c0_i32_0 : i32, i32
  }
  func.func @transform_3(%arg0: i32, %arg1: i32) -> (i32, i32) {
    %c0_i32 = arith.constant 0 : i32
    %c0_i32_0 = arith.constant 0 : i32
    return %c0_i32, %arg1 : i32, i32
  }
  func.func @transform_4(%arg0: i32, %arg1: i32) -> (i32, i32) {
    %c0_i32 = arith.constant 0 : i32
    return %arg0, %arg1 : i32, i32
  }
}

module attributes {stable_mosaic.version = 11 : i64} {
  func.func @_linear_kernel(%arg0: i32, %arg1: i32, %arg2: i32, %arg3: memref<16x24xf32, #tpu.memory_space<vmem>>, %arg4: memref<24x64xf32, #tpu.memory_space<vmem>>, %arg5: memref<16x64xf32, #tpu.memory_space<vmem>>, %arg6: memref<16x64xf32, #tpu.memory_space<vmem>>) attributes {dimension_semantics = [#tpu.dimension_semantics<parallel>, #tpu.dimension_semantics<parallel>, #tpu.dimension_semantics<arbitrary>], iteration_bounds = array<i64: 1, 1, 1>, scalar_prefetch = 0 : i64, scratch_operands = 1 : i64, tpu.core_type = #tpu.core_type<tc>, window_params = [{transform_indices = @transform_0, window_bounds = array<i64: 16, 24>}, {transform_indices = @transform_1, window_bounds = array<i64: 24, 64>}, {transform_indices = @transform_2, window_bounds = array<i64: 16, 64>}]} {
    %c0_i32 = arith.constant 0 : i32
    %0 = arith.cmpi eq, %arg2, %c0_i32 : i32
    %1 = arith.extui %0 : i1 to i32
    %c0_i32_0 = arith.constant 0 : i32
    %2 = arith.cmpi ne, %1, %c0_i32_0 : i32
    scf.if %2 {
      %cst_10 = arith.constant 0.000000e+00 : f32
      %12 = vector.broadcast %cst_10 : f32 to vector<16x64xf32>
      %c0_11 = arith.constant 0 : index
      %c0_12 = arith.constant 0 : index
      %13 = vector.load %arg6[%c0_11, %c0_12] : memref<16x64xf32, #tpu.memory_space<vmem>>, vector<16x64xf32>
      tpu.vector_store %arg6[%c0_11, %c0_12], %12 {strides = array<i32>} : memref<16x64xf32, #tpu.memory_space<vmem>>, vector<16x64xf32>,
    } else {
    }
    %c0 = arith.constant 0 : index
    %c0_1 = arith.constant 0 : index
    %3 = vector.load %arg6[%c0, %c0_1] : memref<16x64xf32, #tpu.memory_space<vmem>>, vector<16x64xf32>
    %c0_2 = arith.constant 0 : index
    %c0_3 = arith.constant 0 : index
    %4 = vector.load %arg3[%c0_2, %c0_3] : memref<16x24xf32, #tpu.memory_space<vmem>>, vector<16x24xf32>
    %c0_4 = arith.constant 0 : index
    %c0_5 = arith.constant 0 : index
    %5 = vector.load %arg4[%c0_4, %c0_5] : memref<24x64xf32, #tpu.memory_space<vmem>>, vector<24x64xf32>
    %cst = arith.constant dense<0.000000e+00> : vector<16x64xf32>
    %6 = tpu.matmul %4, %5, %cst {dimension_numbers = #tpu.dot_dimension_numbers<[1], [0], [0], [1], [0, 0, 1, 1], [], []>} : vector<16x24xf32>, vector<24x64xf32>, vector<16x64xf32> -> vector<16x64xf32>
    %7 = arith.addf %3, %6 : vector<16x64xf32>
    %c0_6 = arith.constant 0 : index
    %c0_7 = arith.constant 0 : index
    %8 = vector.load %arg6[%c0_6, %c0_7] : memref<16x64xf32, #tpu.memory_space<vmem>>, vector<16x64xf32>
    tpu.vector_store %arg6[%c0_6, %c0_7], %7 {strides = array<i32>} : memref<16x64xf32, #tpu.memory_space<vmem>>, vector<16x64xf32>,
    %c0_i32_8 = arith.constant 0 : i32
    %9 = arith.cmpi eq, %arg2, %c0_i32_8 : i32
    %10 = arith.extui %9 : i1 to i32
    %c0_i32_9 = arith.constant 0 : i32
    %11 = arith.cmpi ne, %10, %c0_i32_9 : i32
    scf.if %11 {
      %c0_10 = arith.constant 0 : index
      %c0_11 = arith.constant 0 : index
      %12 = vector.load %arg6[%c0_10, %c0_11] : memref<16x64xf32, #tpu.memory_space<vmem>>, vector<16x64xf32>
      %c0_12 = arith.constant 0 : index
      %c0_13 = arith.constant 0 : index
      %13 = vector.load %arg5[%c0_12, %c0_13] : memref<16x64xf32, #tpu.memory_space<vmem>>, vector<16x64xf32>
      tpu.vector_store %arg5[%c0_12, %c0_13], %12 {strides = array<i32>} : memref<16x64xf32, #tpu.memory_space<vmem>>, vector<16x64xf32>,
    } else {
    }
    return
  }
  func.func @transform_0(%arg0: i32, %arg1: i32, %arg2: i32) -> (i32, i32) {
    %c0_i32 = arith.constant 0 : i32
    return %arg0, %arg2 : i32, i32
  }
  func.func @transform_1(%arg0: i32, %arg1: i32, %arg2: i32) -> (i32, i32) {
    %c0_i32 = arith.constant 0 : i32
    return %arg2, %arg1 : i32, i32
  }
  func.func @transform_2(%arg0: i32, %arg1: i32, %arg2: i32) -> (i32, i32) {
    %c0_i32 = arith.constant 0 : i32
    return %arg0, %arg1 : i32, i32
  }
}

module attributes {stable_mosaic.version = 11 : i64} {
  func.func @_ln_linear_kernel(%arg0: i32, %arg1: i32, %arg2: memref<16x32xf32, #tpu.memory_space<vmem>>, %arg3: memref<1x32xf32, #tpu.memory_space<vmem>>, %arg4: memref<1x32xf32, #tpu.memory_space<vmem>>, %arg5: memref<32x128xf32, #tpu.memory_space<vmem>>, %arg6: memref<1x128xf32, #tpu.memory_space<vmem>>, %arg7: memref<16x128xf32, #tpu.memory_space<vmem>>, %arg8: memref<16x32xf32, #tpu.memory_space<vmem>>) attributes {dimension_semantics = [#tpu.dimension_semantics<parallel>, #tpu.dimension_semantics<arbitrary>], iteration_bounds = array<i64: 1, 1>, scalar_prefetch = 0 : i64, scratch_operands = 1 : i64, tpu.core_type = #tpu.core_type<tc>, window_params = [{transform_indices = @transform_0, window_bounds = array<i64: 16, 32>}, {pipeline_mode = #tpu.pipeline_mode<synchronous>, transform_indices = @transform_1, window_bounds = array<i64: 1, 32>}, {pipeline_mode = #tpu.pipeline_mode<synchronous>, transform_indices = @transform_2, window_bounds = array<i64: 1, 32>}, {transform_indices = @transform_3, window_bounds = array<i64: 32, 128>}, {transform_indices = @transform_4, window_bounds = array<i64: 1, 128>}, {transform_indices = @transform_5, window_bounds = array<i64: 16, 128>}]} {
    %c0_i32 = arith.constant 0 : i32
    %0 = arith.cmpi eq, %arg1, %c0_i32 : i32
    %1 = arith.extui %0 : i1 to i32
    %c0_i32_0 = arith.constant 0 : i32
    %2 = arith.cmpi ne, %1, %c0_i32_0 : i32
    scf.if %2 {
      %c0_12 = arith.constant 0 : index
      %c0_13 = arith.constant 0 : index
      %23 = vector.load %arg2[%c0_12, %c0_13] : memref<16x32xf32, #tpu.memory_space<vmem>>, vector<16x32xf32>
      %cst_14 = arith.constant dense<0.000000e+00> : vector<16xf32>
      %24 = vector.multi_reduction <add>, %23, %cst_14 [1] : vector<16x32xf32> to vector<16xf32>
      %25 = vector.shape_cast %24 : vector<16xf32> to vector<16x1xf32>
      %cst_15 = arith.constant 3.200000e+01 : f32
      %26 = vector.broadcast %cst_15 : f32 to vector<16x1xf32>
      %27 = arith.divf %25, %26 : vector<16x1xf32>
      %28 = vector.broadcast %27 : vector<16x1xf32> to vector<16x32xf32>
      %29 = arith.subf %23, %28 : vector<16x32xf32>
      %30 = arith.mulf %29, %29 : vector<16x32xf32>
      %cst_16 = arith.constant dense<0.000000e+00> : vector<16xf32>
      %31 = vector.multi_reduction <add>, %30, %cst_16 [1] : vector<16x32xf32> to vector<16xf32>
      %32 = vector.shape_cast %31 : vector<16xf32> to vector<16x1xf32>
      %cst_17 = arith.constant 3.200000e+01 : f32
      %33 = vector.broadcast %cst_17 : f32 to vector<16x1xf32>
      %34 = arith.divf %32, %33 : vector<16x1xf32>
      %35 = vector.broadcast %27 : vector<16x1xf32> to vector<16x32xf32>
      %36 = arith.subf %23, %35 : vector<16x32xf32>
      %cst_18 = arith.constant 9.99999974E-6 : f32
      %37 = vector.broadcast %cst_18 : f32 to vector<16x1xf32>
      %38 = arith.addf %34, %37 : vector<16x1xf32>
      %39 = math.rsqrt %38 : vector<16x1xf32>
      %40 = vector.broadcast %39 : vector<16x1xf32> to vector<16x32xf32>
      %41 = arith.mulf %36, %40 : vector<16x32xf32>
      %c0_19 = arith.constant 0 : index
      %c0_20 = arith.constant 0 : index
      %42 = vector.load %arg3[%c0_19, %c0_20] : memref<1x32xf32, #tpu.memory_space<vmem>>, vector<1x32xf32>
      %43 = vector.broadcast %42 : vector<1x32xf32> to vector<16x32xf32>
      %44 = arith.mulf %41, %43 : vector<16x32xf32>
      %c0_21 = arith.constant 0 : index
      %c0_22 = arith.constant 0 : index
      %45 = vector.load %arg4[%c0_21, %c0_22] : memref<1x32xf32, #tpu.memory_space<vmem>>, vector<1x32xf32>
      %46 = vector.broadcast %45 : vector<1x32xf32> to vector<16x32xf32>
      %47 = arith.addf %44, %46 : vector<16x32xf32>
      %c0_23 = arith.constant 0 : index
      %c0_24 = arith.constant 0 : index
      %48 = vector.load %arg8[%c0_23, %c0_24] : memref<16x32xf32, #tpu.memory_space<vmem>>, vector<16x32xf32>
      tpu.vector_store %arg8[%c0_23, %c0_24], %47 {strides = array<i32>} : memref<16x32xf32, #tpu.memory_space<vmem>>, vector<16x32xf32>,
    } else {
    }
    %c0 = arith.constant 0 : index
    %c0_1 = arith.constant 0 : index
    %3 = vector.load %arg8[%c0, %c0_1] : memref<16x32xf32, #tpu.memory_space<vmem>>, vector<16x32xf32>
    %c0_2 = arith.constant 0 : index
    %c0_3 = arith.constant 0 : index
    %4 = vector.load %arg5[%c0_2, %c0_3] : memref<32x128xf32, #tpu.memory_space<vmem>>, vector<32x128xf32>
    %cst = arith.constant dense<0.000000e+00> : vector<16x128xf32>
    %5 = tpu.matmul %3, %4, %cst {dimension_numbers = #tpu.dot_dimension_numbers<[1], [0], [0], [1], [0, 0, 1, 1], [], []>} : vector<16x32xf32>, vector<32x128xf32>, vector<16x128xf32> -> vector<16x128xf32>
    %c0_4 = arith.constant 0 : index
    %c0_5 = arith.constant 0 : index
    %6 = vector.load %arg6[%c0_4, %c0_5] : memref<1x128xf32, #tpu.memory_space<vmem>>, vector<1x128xf32>
    %7 = vector.broadcast %6 : vector<1x128xf32> to vector<16x128xf32>
    %8 = arith.addf %5, %7 : vector<16x128xf32>
    %cst_6 = arith.constant 5.000000e-01 : f32
    %9 = vector.broadcast %cst_6 : f32 to vector<16x128xf32>
    %10 = arith.mulf %9, %8 : vector<16x128xf32>
    %cst_7 = arith.constant 4.471500e-02 : f32
    %11 = vector.broadcast %cst_7 : f32 to vector<16x128xf32>
    %12 = arith.mulf %11, %8 : vector<16x128xf32>
    %13 = arith.mulf %12, %8 : vector<16x128xf32>
    %14 = arith.mulf %13, %8 : vector<16x128xf32>
    %15 = arith.addf %8, %14 : vector<16x128xf32>
    %cst_8 = arith.constant 0.797884583 : f32
    %16 = vector.broadcast %cst_8 : f32 to vector<16x128xf32>
    %17 = arith.mulf %16, %15 : vector<16x128xf32>
    %18 = math.tanh %17 : vector<16x128xf32>
    %cst_9 = arith.constant 1.000000e+00 : f32
    %19 = vector.broadcast %cst_9 : f32 to vector<16x128xf32>
    %20 = arith.addf %19, %18 : vector<16x128xf32>
    %21 = arith.mulf %10, %20 : vector<16x128xf32>
    %c0_10 = arith.constant 0 : index
    %c0_11 = arith.constant 0 : index
    %22 = vector.load %arg7[%c0_10, %c0_11] : memref<16x128xf32, #tpu.memory_space<vmem>>, vector<16x128xf32>
    tpu.vector_store %arg7[%c0_10, %c0_11], %21 {strides = array<i32>} : memref<16x128xf32, #tpu.memory_space<vmem>>, vector<16x128xf32>,
    return
  }
  func.func @transform_0(%arg0: i32, %arg1: i32) -> (i32, i32) {
    %c0_i32 = arith.constant 0 : i32
    %c0_i32_0 = arith.constant 0 : i32
    return %arg0, %c0_i32 : i32, i32
  }
  func.func @transform_1(%arg0: i32, %arg1: i32) -> (i32, i32) {
    %c0_i32 = arith.constant 0 : i32
    %c0_i32_0 = arith.constant 0 : i32
    %c0_i32_1 = arith.constant 0 : i32
    return %c0_i32, %c0_i32_0 : i32, i32
  }
  func.func @transform_2(%arg0: i32, %arg1: i32) -> (i32, i32) {
    %c0_i32 = arith.constant 0 : i32
    %c0_i32_0 = arith.constant 0 : i32
    %c0_i32_1 = arith.constant 0 : i32
    return %c0_i32, %c0_i32_0 : i32, i32
  }
  func.func @transform_3(%arg0: i32, %arg1: i32) -> (i32, i32) {
    %c0_i32 = arith.constant 0 : i32
    %c0_i32_0 = arith.constant 0 : i32
    return %c0_i32, %arg1 : i32, i32
  }
  func.func @transform_4(%arg0: i32, %arg1: i32) -> (i32, i32) {
    %c0_i32 = arith.constant 0 : i32
    %c0_i32_0 = arith.constant 0 : i32
    return %c0_i32, %arg1 : i32, i32
  }
  func.func @transform_5(%arg0: i32, %arg1: i32) -> (i32, i32) {
    %c0_i32 = arith.constant 0 : i32
    return %arg0, %arg1 : i32, i32
  }
}

module attributes {stable_mosaic.version = 11 : i64} {
  func.func @_linear_kernel(%arg0: i32, %arg1: i32, %arg2: i32, %arg3: memref<16x128xf32, #tpu.memory_space<vmem>>, %arg4: memref<128x32xf32, #tpu.memory_space<vmem>>, %arg5: memref<1x32xf32, #tpu.memory_space<vmem>>, %arg6: memref<16x32xf32, #tpu.memory_space<vmem>>, %arg7: memref<16x32xf32, #tpu.memory_space<vmem>>, %arg8: memref<16x32xf32, #tpu.memory_space<vmem>>) attributes {dimension_semantics = [#tpu.dimension_semantics<parallel>, #tpu.dimension_semantics<parallel>, #tpu.dimension_semantics<arbitrary>], iteration_bounds = array<i64: 1, 1, 1>, scalar_prefetch = 0 : i64, scratch_operands = 1 : i64, tpu.core_type = #tpu.core_type<tc>, window_params = [{transform_indices = @transform_0, window_bounds = array<i64: 16, 128>}, {transform_indices = @transform_1, window_bounds = array<i64: 128, 32>}, {transform_indices = @transform_2, window_bounds = array<i64: 1, 32>}, {transform_indices = @transform_3, window_bounds = array<i64: 16, 32>}, {transform_indices = @transform_4, window_bounds = array<i64: 16, 32>}]} {
    %c0_i32 = arith.constant 0 : i32
    %0 = arith.cmpi eq, %arg2, %c0_i32 : i32
    %1 = arith.extui %0 : i1 to i32
    %c0_i32_0 = arith.constant 0 : i32
    %2 = arith.cmpi ne, %1, %c0_i32_0 : i32
    scf.if %2 {
      %cst_10 = arith.constant 0.000000e+00 : f32
      %12 = vector.broadcast %cst_10 : f32 to vector<16x32xf32>
      %c0_11 = arith.constant 0 : index
      %c0_12 = arith.constant 0 : index
      %13 = vector.load %arg8[%c0_11, %c0_12] : memref<16x32xf32, #tpu.memory_space<vmem>>, vector<16x32xf32>
      tpu.vector_store %arg8[%c0_11, %c0_12], %12 {strides = array<i32>} : memref<16x32xf32, #tpu.memory_space<vmem>>, vector<16x32xf32>,
    } else {
    }
    %c0 = arith.constant 0 : index
    %c0_1 = arith.constant 0 : index
    %3 = vector.load %arg8[%c0, %c0_1] : memref<16x32xf32, #tpu.memory_space<vmem>>, vector<16x32xf32>
    %c0_2 = arith.constant 0 : index
    %c0_3 = arith.constant 0 : index
    %4 = vector.load %arg3[%c0_2, %c0_3] : memref<16x128xf32, #tpu.memory_space<vmem>>, vector<16x128xf32>
    %c0_4 = arith.constant 0 : index
    %c0_5 = arith.constant 0 : index
    %5 = vector.load %arg4[%c0_4, %c0_5] : memref<128x32xf32, #tpu.memory_space<vmem>>, vector<128x32xf32>
    %cst = arith.constant dense<0.000000e+00> : vector<16x32xf32>
    %6 = tpu.matmul %4, %5, %cst {dimension_numbers = #tpu.dot_dimension_numbers<[1], [0], [0], [1], [0, 0, 1, 1], [], []>} : vector<16x128xf32>, vector<128x32xf32>, vector<16x32xf32> -> vector<16x32xf32>
    %7 = arith.addf %3, %6 : vector<16x32xf32>
    %c0_6 = arith.constant 0 : index
    %c0_7 = arith.constant 0 : index
    %8 = vector.load %arg8[%c0_6, %c0_7] : memref<16x32xf32, #tpu.memory_space<vmem>>, vector<16x32xf32>
    tpu.vector_store %arg8[%c0_6, %c0_7], %7 {strides = array<i32>} : memref<16x32xf32, #tpu.memory_space<vmem>>, vector<16x32xf32>,
    %c0_i32_8 = arith.constant 0 : i32
    %9 = arith.cmpi eq, %arg2, %c0_i32_8 : i32
    %10 = arith.extui %9 : i1 to i32
    %c0_i32_9 = arith.constant 0 : i32
    %11 = arith.cmpi ne, %10, %c0_i32_9 : i32
    scf.if %11 {
      %c0_10 = arith.constant 0 : index
      %c0_11 = arith.constant 0 : index
      %12 = vector.load %arg8[%c0_10, %c0_11] : memref<16x32xf32, #tpu.memory_space<vmem>>, vector<16x32xf32>
      %c0_12 = arith.constant 0 : index
      %c0_13 = arith.constant 0 : index
      %13 = vector.load %arg5[%c0_12, %c0_13] : memref<1x32xf32, #tpu.memory_space<vmem>>, vector<1x32xf32>
      %14 = vector.broadcast %13 : vector<1x32xf32> to vector<16x32xf32>
      %15 = arith.addf %12, %14 : vector<16x32xf32>
      %c0_14 = arith.constant 0 : index
      %c0_15 = arith.constant 0 : index
      %16 = vector.load %arg6[%c0_14, %c0_15] : memref<16x32xf32, #tpu.memory_space<vmem>>, vector<16x32xf32>
      %17 = arith.addf %15, %16 : vector<16x32xf32>
      %c0_16 = arith.constant 0 : index
      %c0_17 = arith.constant 0 : index
      %18 = vector.load %arg7[%c0_16, %c0_17] : memref<16x32xf32, #tpu.memory_space<vmem>>, vector<16x32xf32>
      tpu.vector_store %arg7[%c0_16, %c0_17], %17 {strides = array<i32>} : memref<16x32xf32, #tpu.memory_space<vmem>>, vector<16x32xf32>,
    } else {
    }
    return
  }
  func.func @transform_0(%arg0: i32, %arg1: i32, %arg2: i32) -> (i32, i32) {
    %c0_i32 = arith.constant 0 : i32
    return %arg0, %arg2 : i32, i32
  }
  func.func @transform_1(%arg0: i32, %arg1: i32, %arg2: i32) -> (i32, i32) {
    %c0_i32 = arith.constant 0 : i32
    return %arg2, %arg1 : i32, i32
  }
  func.func @transform_2(%arg0: i32, %arg1: i32, %arg2: i32) -> (i32, i32) {
    %c0_i32 = arith.constant 0 : i32
    %c0_i32_0 = arith.constant 0 : i32
    return %c0_i32, %arg1 : i32, i32
  }
  func.func @transform_3(%arg0: i32, %arg1: i32, %arg2: i32) -> (i32, i32) {
    %c0_i32 = arith.constant 0 : i32
    return %arg0, %arg1 : i32, i32
  }
  func.func @transform_4(%arg0: i32, %arg1: i32, %arg2: i32) -> (i32, i32) {
    %c0_i32 = arith.constant 0 : i32
    return %arg0, %arg1 : i32, i32
  }
}

</mosaic_0001>

<llo_original>
// kernel: transformer_decoder_layer.9
$region0: #{transformer_decoder_layer.9}
  #allocation0 [shape = 'u32[]', space=smem, size = 0x4, offset = 0x4, fixed_abs, tag = 'smem constant byte address 0x4 - core index']
  #allocation1 [shape = 'u32[72,128]{1,0:T(1,128)}', space=vmem, size = 0x9000, scoped, tag = 'internal scratch']
  #allocation2 [shape = 'f32[16,32]{1,0:T(8,128)}', space=vmem, size = 0x2000, scoped, tag = 'scratch operand']
  %s0 = inlined_call_operand.vmem [shape: f32[16,32], index: 0, kind: input, shape index: {}]
  %s1 = inlined_call_operand.vmem [shape: f32[1,32], index: 1, kind: input, shape index: {}]
  %s2 = inlined_call_operand.vmem [shape: f32[1,32], index: 2, kind: input, shape index: {}]
  %s3 = inlined_call_operand.hbm [shape: f32[32,96], index: 3, kind: input, shape index: {}]
  %s4 = inlined_call_operand.vmem [shape: f32[16,96], index: 4, kind: output, shape index: {}]
  %s5 = sld [smem:[#allocation0]]
  $region34: #{transformer_decoder_layer.9} parent=0
    _
  %s7 = ssub.s32 1, %s5
  %s8 = scalar_select 0, %s7, %s5
  $region1: #{transformer_decoder_layer.9} parent=0
    #allocation3 [shape = 'u8[16384]{0}', space=vmem, size = 0x4000, scoped, tag = 'input window, operand 3, single buffered']
    #allocation4 [shape = 's32[1]{0}', space=sflag, size = 0x4, scoped, tag = 'scoped memory for transformer_decoder_layer.9']
    %9 = vsyncpa [#allocation4], 0
    // Predicated region
    $region2: #{transformer_decoder_layer.9} parent=1 // pred_check
      _
    $region3: #{transformer_decoder_layer.9} parent=1 // pred_check_branch
      %11 = sbr.rel (0) target = $region5
    $region4: #{transformer_decoder_layer.9} parent=1 // pred_region
      _
    $region5: #{transformer_decoder_layer.9} parent=1 // pred_fallthru
      _
    // Predicated region
    $region6: #{transformer_decoder_layer.9} parent=1 // pred_check
      _
    $region7: #{transformer_decoder_layer.9} parent=1 // pred_check_branch
      %13 = sbr.rel (0) target = $region9
    $region8: #{transformer_decoder_layer.9} parent=1 // pred_region
      _
    $region9: #{transformer_decoder_layer.9} parent=1 // pred_fallthru
      _
    // Predicated region
    $region10: #{transformer_decoder_layer.9} parent=1 // pred_check
      _
    $region11: #{transformer_decoder_layer.9} parent=1 // pred_check_branch
      %15 = sbr.rel (0) target = $region13
    $region12: #{transformer_decoder_layer.9} parent=1 // pred_region
      _
    $region13: #{transformer_decoder_layer.9} parent=1 // pred_fallthru
      _
    // Predicated region
    $region14: #{transformer_decoder_layer.9} parent=1 // pred_check
      _
    $region15: #{transformer_decoder_layer.9} parent=1 // pred_check_branch
      %17 = sbr.rel (0) target = $region17
    $region16: #{transformer_decoder_layer.9} parent=1 // pred_region
      %19 = vsyncadd [#allocation4], 0
      %s20 = sshll.u32 %s3, 4
      %s21 = int_to_ptr.hbm [resolvable:$true] %s20
      %s22 = sshll.u32 [#allocation3], 4
      %s23 = int_to_ptr.vmem [resolvable:$true] %s22
      %28 = dma.hbm_to_vmem [thread:$0]  %s21, 512, %s23, [#allocation4], 128, 128, 8
    $region17: #{transformer_decoder_layer.9} parent=1 // pred_fallthru
      _
    // Predicated region
    $region18: #{transformer_decoder_layer.9} parent=1 // pred_check
      _
    $region19: #{transformer_decoder_layer.9} parent=1 // pred_check_branch
      %30 = sbr.rel (0) target = $region21
    $region20: #{transformer_decoder_layer.9} parent=1 // pred_region
      %32 = dma.done [#allocation4], 512
    $region21: #{transformer_decoder_layer.9} parent=1 // pred_fallthru
      _
    %p33 = scmp.eq.s32.totalorder 0, 0
    // Predicated region
    $region22: #{transformer_decoder_layer.9} parent=1 // pred_check
      %p34 = pneg %p33
    $region23: #{transformer_decoder_layer.9} parent=1 // pred_check_branch
      %36 = sbr.rel (%p34) target = $region25
    $region24: #{transformer_decoder_layer.9} parent=1 // pred_region
      %v37 = vld [vmem:[%s0] sm:$0xff]
      %v38 = vld [vmem:[%s0 + $0x8] sm:$0xff]
      %vm39 = vcmask 261120
      %v40 = vsel %vm39, %v37, 0.0
      %41 = vadd.xlane.f32.xlu0 %v40
      %v42 = vpop.xlane.xlu0 %41
      %v43 = vsel %vm39, %v38, 0.0
      %44 = vadd.xlane.f32.xlu0 %v43
      %v45 = vpop.xlane.xlu0 %44
      %v46 = vrcp.pop 32.0
      %v47 = vmul.f32 32.0, %v46
      %v48 = vsub.f32 1.0, %v47
      %v49 = vmul.f32 %v46, %v48
      %v50 = vadd.f32 %v46, %v49
      %vm51 = vweird.f32 %v46
      %v52 = vsel %vm51, %v46, %v50
      %v53 = vmul.f32 %v42, %v52
      %v54 = vmul.f32 %v45, %v52
      %v55 = vsub.f32 %v37, %v53
      %v56 = vsub.f32 %v38, %v54
      %v57 = vmul.f32 %v55, %v55
      %v58 = vmul.f32 %v56, %v56
      %v59 = vsel %vm39, %v57, 0.0
      %60 = vadd.xlane.f32.xlu0 %v59
      %v61 = vpop.xlane.xlu0 %60
      %v62 = vsel %vm39, %v58, 0.0
      %63 = vadd.xlane.f32.xlu0 %v62
      %v64 = vpop.xlane.xlu0 %63
      %v65 = vmul.f32 %v61, %v52
      %v66 = vmul.f32 %v64, %v52
      %v67 = vadd.f32 %v65, 1e-05
      %v68 = vadd.f32 %v66, 1e-05
      %v69 = vrsqrt.pop %v67
      %v70 = vmul.f32 %v69, %v67
      %v71 = vmul.f32 %v70, %v69
      %v72 = vmul.f32 0.5, %v71
      %v73 = vsub.f32 1.5, %v72
      %v74 = vmul.f32 %v69, %v73
      %vm75 = vweird.f32 %v67
      %vm76 = vweird.f32 %v69
      %vm77 = vmor %vm75, %vm76
      %v78 = vsel %vm77, %v69, %v74
      %v79 = vrsqrt.pop %v68
      %v80 = vmul.f32 %v79, %v68
      %v81 = vmul.f32 %v80, %v79
      %v82 = vmul.f32 0.5, %v81
      %v83 = vsub.f32 1.5, %v82
      %v84 = vmul.f32 %v79, %v83
      %vm85 = vweird.f32 %v68
      %vm86 = vweird.f32 %v79
      %vm87 = vmor %vm85, %vm86
      %v88 = vsel %vm87, %v79, %v84
      %v89 = vmul.f32 %v55, %v78
      %v90 = vmul.f32 %v56, %v88
      %v91 = vld [vmem:[%s1] sm:$0x1]
      %v93 = vperm.slane %v91, 0
      %v95 = vmul.f32 %v89, %v93
      %v96 = vmul.f32 %v90, %v93
      %v97 = vld [vmem:[%s2] sm:$0x1]
      %v99 = vperm.slane %v97, 0
      %v101 = vadd.f32 %v95, %v99
      %v102 = vadd.f32 %v96, %v99
      %103 = vst.msk [vmem:[#allocation2] sm:$0xff] %vm39, %v101
      %104 = vst.msk [vmem:[#allocation2 + $0x8] sm:$0xff] %vm39, %v102
    $region25: #{transformer_decoder_layer.9} parent=1 // pred_fallthru
      _
    %v105 = vld [vmem:[#allocation2] sm:$0xff]
    %v106 = vld [vmem:[#allocation2 + $0x8] sm:$0xff]
    %v107 = vld [vmem:[#allocation3] sm:$0xff]
    %v108 = vld [vmem:[#allocation3 + $0x8] sm:$0xff]
    %v109 = vld [vmem:[#allocation3 + $0x10] sm:$0xff]
    %v110 = vld [vmem:[#allocation3 + $0x18] sm:$0xff]
    %vm111 = vcmask 261120
    %v113 = vsel %vm111, %v105, 0
    %v116 = vsel %vm111, %v106, 0
    %118 = vmatpush.msra.mxu0 0.0
    %119 = vmatpush.msra.mxu0 0.0
    %120 = vmatpush.msra.mxu0 0.0
    %121 = vmatpush.msra.mxu0 0.0
    %122 = vmatpush.msra.mxu0 0.0
    %123 = vmatpush.msra.mxu0 0.0
    %124 = vmatpush.msra.mxu0 0.0
    %125 = vmatpush.msra.mxu0 0.0
    %126 = vmatpush.msra.mxu0 0.0
    %127 = vmatpush.msra.mxu0 0.0
    %128 = vmatpush.msra.mxu0 0.0
    %129 = vmatpush.msra.mxu0 0.0
    %130 = vmatpush.msra.mxu0 %v110
    %131 = vmatpush.msra.mxu0 %v109
    %132 = vmatpush.msra.mxu0 %v108
    %133 = vmatpush.msra.mxu0 %v107
    %134 = vmatmul.f32.gmra.mxu0 %v113
    %v135 = vpop.f32.mrf.mxu0
    %v136 = vadd.f32 0.0, %v135
    %137 = vmatmul.f32.gmra.mxu0 %v116
    %v138 = vpop.f32.mrf.mxu0
    %v139 = vadd.f32 0.0, %v138
    %140 = vdwg.mxu0
    %vm141 = vcmask 785408
    %142 = vst.msk [vmem:[%s4] sm:$0xff] %vm141, %v136
    %143 = vst.msk [vmem:[%s4 + $0x8] sm:$0xff] %vm141, %v139
    // Predicated region
    $region26: #{transformer_decoder_layer.9} parent=1 // pred_check
      _
    $region27: #{transformer_decoder_layer.9} parent=1 // pred_check_branch
      %145 = sbr.rel (0) target = $region29
    $region28: #{transformer_decoder_layer.9} parent=1 // pred_region
      _
    $region29: #{transformer_decoder_layer.9} parent=1 // pred_fallthru
      _
    // Predicated region
    $region30: #{transformer_decoder_layer.9} parent=1 // pred_check
      _
    $region31: #{transformer_decoder_layer.9} parent=1 // pred_check_branch
      %147 = sbr.rel (0) target = $region33
    $region32: #{transformer_decoder_layer.9} parent=1 // pred_region
      _
    $region33: #{transformer_decoder_layer.9} parent=1 // pred_fallthru
      _
    %148 = vsyncpa [#allocation4], 1

// kernel: transformer_decoder_layer.11
$region0: #{transformer_decoder_layer.11}
  #allocation0 [shape = 'u32[]', space=smem, size = 0x4, offset = 0x4, fixed_abs, tag = 'smem constant byte address 0x4 - core index']
  #allocation1 [shape = 'u32[72,128]{1,0:T(1,128)}', space=vmem, size = 0x9000, scoped, tag = 'internal scratch']
  #allocation2 [shape = 'f32[16,32]{1,0:T(8,128)}', space=vmem, size = 0x2000, scoped, tag = 'scratch operand']
  %s0 = inlined_call_operand.vmem [shape: f32[16,32], index: 0, kind: input, shape index: {}]
  %s1 = inlined_call_operand.vmem [shape: f32[32,32], index: 1, kind: input, shape index: {}]
  %s2 = inlined_call_operand.vmem [shape: f32[1,32], index: 2, kind: input, shape index: {}]
  %s3 = inlined_call_operand.vmem [shape: f32[16,32], index: 3, kind: input, shape index: {}]
  %s4 = inlined_call_operand.vmem [shape: f32[16,32], index: 4, kind: output, shape index: {}]
  %s5 = sld [smem:[#allocation0]]
  $region34: #{transformer_decoder_layer.11} parent=0
    _
  %s7 = ssub.s32 1, %s5
  %s8 = scalar_select 0, %s7, %s5
  // Predicated region
  $region2: #{transformer_decoder_layer.11} parent=0 // pred_check
    _
  $region3: #{transformer_decoder_layer.11} parent=0 // pred_check_branch
    %10 = sbr.rel (0) target = $region5
  $region4: #{transformer_decoder_layer.11} parent=0 // pred_region
    _
  $region5: #{transformer_decoder_layer.11} parent=0 // pred_fallthru
    _
  // Predicated region
  $region6: #{transformer_decoder_layer.11} parent=0 // pred_check
    _
  $region7: #{transformer_decoder_layer.11} parent=0 // pred_check_branch
    %12 = sbr.rel (0) target = $region9
  $region8: #{transformer_decoder_layer.11} parent=0 // pred_region
    _
  $region9: #{transformer_decoder_layer.11} parent=0 // pred_fallthru
    _
  // Predicated region
  $region10: #{transformer_decoder_layer.11} parent=0 // pred_check
    _
  $region11: #{transformer_decoder_layer.11} parent=0 // pred_check_branch
    %14 = sbr.rel (0) target = $region13
  $region12: #{transformer_decoder_layer.11} parent=0 // pred_region
    _
  $region13: #{transformer_decoder_layer.11} parent=0 // pred_fallthru
    _
  // Predicated region
  $region14: #{transformer_decoder_layer.11} parent=0 // pred_check
    _
  $region15: #{transformer_decoder_layer.11} parent=0 // pred_check_branch
    %16 = sbr.rel (0) target = $region17
  $region16: #{transformer_decoder_layer.11} parent=0 // pred_region
    _
  $region17: #{transformer_decoder_layer.11} parent=0 // pred_fallthru
    _
  %p17 = scmp.eq.s32.totalorder 0, 0
  // Predicated region
  $region18: #{transformer_decoder_layer.11} parent=0 // pred_check
    %p18 = pneg %p17
  $region19: #{transformer_decoder_layer.11} parent=0 // pred_check_branch
    %20 = sbr.rel (%p18) target = $region21
  $region20: #{transformer_decoder_layer.11} parent=0 // pred_region
    %vm21 = vcmask 261120
    %22 = vst.msk [vmem:[#allocation2] sm:$0xff] %vm21, 0.0
    %23 = vst.msk [vmem:[#allocation2 + $0x8] sm:$0xff] %vm21, 0.0
  $region21: #{transformer_decoder_layer.11} parent=0 // pred_fallthru
    _
  %v24 = vld [vmem:[#allocation2] sm:$0xff]
  %v25 = vld [vmem:[#allocation2 + $0x8] sm:$0xff]
  %v26 = vld [vmem:[%s0] sm:$0xff]
  %v27 = vld [vmem:[%s0 + $0x8] sm:$0xff]
  %v28 = vld [vmem:[%s1] sm:$0xff]
  %v29 = vld [vmem:[%s1 + $0x8] sm:$0xff]
  %v30 = vld [vmem:[%s1 + $0x10] sm:$0xff]
  %v31 = vld [vmem:[%s1 + $0x18] sm:$0xff]
  %vm32 = vcmask 261120
  %v34 = vsel %vm32, %v26, 0
  %v37 = vsel %vm32, %v27, 0
  %39 = vmatpush.msra.mxu0 0.0
  %40 = vmatpush.msra.mxu0 0.0
  %41 = vmatpush.msra.mxu0 0.0
  %42 = vmatpush.msra.mxu0 0.0
  %43 = vmatpush.msra.mxu0 0.0
  %44 = vmatpush.msra.mxu0 0.0
  %45 = vmatpush.msra.mxu0 0.0
  %46 = vmatpush.msra.mxu0 0.0
  %47 = vmatpush.msra.mxu0 0.0
  %48 = vmatpush.msra.mxu0 0.0
  %49 = vmatpush.msra.mxu0 0.0
  %50 = vmatpush.msra.mxu0 0.0
  %51 = vmatpush.msra.mxu0 %v31
  %52 = vmatpush.msra.mxu0 %v30
  %53 = vmatpush.msra.mxu0 %v29
  %54 = vmatpush.msra.mxu0 %v28
  %55 = vmatmul.f32.gmra.mxu0 %v34
  %v56 = vpop.f32.mrf.mxu0
  %v57 = vadd.f32 0.0, %v56
  %58 = vmatmul.f32.gmra.mxu0 %v37
  %v59 = vpop.f32.mrf.mxu0
  %v60 = vadd.f32 0.0, %v59
  %61 = vdwg.mxu0
  %v62 = vadd.f32 %v24, %v57
  %v63 = vadd.f32 %v25, %v60
  %64 = vst.msk [vmem:[#allocation2] sm:$0xff] %vm32, %v62
  %65 = vst.msk [vmem:[#allocation2 + $0x8] sm:$0xff] %vm32, %v63
  // Predicated region
  $region22: #{transformer_decoder_layer.11} parent=0 // pred_check
    %p66 = pneg %p17
  $region23: #{transformer_decoder_layer.11} parent=0 // pred_check_branch
    %68 = sbr.rel (%p66) target = $region25
  $region24: #{transformer_decoder_layer.11} parent=0 // pred_region
    %v69 = vld [vmem:[#allocation2] sm:$0xff]
    %v70 = vld [vmem:[#allocation2 + $0x8] sm:$0xff]
    %v71 = vld [vmem:[%s2] sm:$0x1]
    %v73 = vperm.slane %v71, 0
    %v75 = vadd.f32 %v69, %v73
    %v76 = vadd.f32 %v70, %v73
    %v77 = vld [vmem:[%s3] sm:$0xff]
    %v78 = vld [vmem:[%s3 + $0x8] sm:$0xff]
    %v79 = vadd.f32 %v75, %v77
    %v80 = vadd.f32 %v76, %v78
    %81 = vst.msk [vmem:[%s4] sm:$0xff] %vm32, %v79
    %82 = vst.msk [vmem:[%s4 + $0x8] sm:$0xff] %vm32, %v80
  $region25: #{transformer_decoder_layer.11} parent=0 // pred_fallthru
    _
  // Predicated region
  $region26: #{transformer_decoder_layer.11} parent=0 // pred_check
    _
  $region27: #{transformer_decoder_layer.11} parent=0 // pred_check_branch
    %84 = sbr.rel (0) target = $region29
  $region28: #{transformer_decoder_layer.11} parent=0 // pred_region
    _
  $region29: #{transformer_decoder_layer.11} parent=0 // pred_fallthru
    _
  // Predicated region
  $region30: #{transformer_decoder_layer.11} parent=0 // pred_check
    _
  $region31: #{transformer_decoder_layer.11} parent=0 // pred_check_branch
    %86 = sbr.rel (0) target = $region33
  $region32: #{transformer_decoder_layer.11} parent=0 // pred_region
    _
  $region33: #{transformer_decoder_layer.11} parent=0 // pred_fallthru
    _

// kernel: transformer_decoder_layer.10
$region0: #{transformer_decoder_layer.10}
  #allocation0 [shape = 'u32[]', space=smem, size = 0x4, offset = 0x4, fixed_abs, tag = 'smem constant byte address 0x4 - core index']
  #allocation1 [shape = 'u32[72,128]{1,0:T(1,128)}', space=vmem, size = 0x9000, scoped, tag = 'internal scratch']
  #allocation2 [shape = 'f32[8,1]{1,0:T(8,128)}', space=vmem, size = 0x1000, scoped, tag = 'scratch operand']
  #allocation3 [shape = 'f32[8,1]{1,0:T(8,128)}', space=vmem, size = 0x1000, scoped, tag = 'scratch operand']
  #allocation4 [shape = 'f32[8,16]{1,0:T(8,128)}', space=vmem, size = 0x1000, scoped, tag = 'scratch operand']
  %s0 = inlined_call_operand.vmem [shape: f32[2,2,8,16], index: 0, kind: input, shape index: {}]
  %s1 = inlined_call_operand.vmem [shape: f32[2,2,8,16], index: 1, kind: input, shape index: {}]
  %s2 = inlined_call_operand.vmem [shape: f32[2,2,8,16], index: 2, kind: input, shape index: {}]
  %s3 = inlined_call_operand.vmem [shape: f32[2,2,8,16], index: 3, kind: output, shape index: {}]
  %s4 = sld [smem:[#allocation0]]
  $region53: #{transformer_decoder_layer.10} parent=0
    _
  %s6 = ssub.s32 1, %s4
  %s7 = scalar_select 0, %s6, %s4
  loop: start=0, step=1, limit=6
  $region2: #{transformer_decoder_layer.10} parent=0 // loop_pre_header
    _
  $region3: #{transformer_decoder_layer.10} parent=0 // loop_header
    %s9 = sphi 0, %s13
    %p10 = scmp.ge.s32.totalorder %s9, 6
    %s16 = sphi 0, %s42
    %s17 = sphi 0, %s38
    %s18 = sphi 0, %s34
    %s19 = sphi 0, %s30
    %s20 = sphi 0, %s16
    %s21 = sphi 0, %s17
    %s22 = sphi 0, %s18
    %s23 = sphi 0, %s19
    %s24 = sphi 0, %s20
    %s25 = sphi 0, %s21
    %s26 = sphi 0, %s22
    %s27 = sphi 0, %s23
    %s49 = sphi 0, %s51
    %s52 = sphi 0, %s49
    %s53 = sphi 0, %s52
    %s69 = sphi 0, %s53
    %s79 = sphi 0, %s81
    %s82 = sphi 0, %s79
    %s83 = sphi 0, %s82
    %s99 = sphi 0, %s83
    %s109 = sphi 0, %s111
    %s112 = sphi 0, %s109
    %s113 = sphi 0, %s112
    %s129 = sphi 0, %s113
    %s139 = sphi 0, %s141
    %s142 = sphi 0, %s139
    %s143 = sphi 0, %s142
    %s159 = sphi 0, %s143
  $region4: #{transformer_decoder_layer.10} parent=0 // loop_header_branch
    %12 = sbr.rel (%p10) target = $region8
  $region5: #{transformer_decoder_layer.10} parent=0 // loop_body
    %s14 = ssub.s32 %s9, 1
    %s15 = ssub.s32 %s9, 2
    %s28 = sadd.s32 1, %s19
    %p29 = scmp.ge.s32.totalorder %s28, 1
    %s30 = scalar_select %p29, 0, %s28
    %s31 = sadd.s32 1, %s18
    %s32 = scalar_select %p29, %s31, %s18
    %p33 = scmp.ge.s32.totalorder %s32, 1
    %s34 = scalar_select %p33, 0, %s32
    %s35 = sadd.s32 1, %s17
    %s36 = scalar_select %p33, %s35, %s17
    %p37 = scmp.ge.s32.totalorder %s36, 2
    %s38 = scalar_select %p37, 0, %s36
    %s39 = sadd.s32 1, %s16
    %s40 = scalar_select %p37, %s39, %s16
    %p41 = scmp.ge.s32.totalorder %s40, 2
    %s42 = scalar_select %p41, 0, %s40
    %s43 = ssub.s32 %s16, %s42
    %s44 = ssub.s32 %s17, %s38
    %s45 = sor.u32 %s43, %s44
    %s46 = ssub.s32 %s18, %s34
    %s47 = sor.u32 %s45, %s46
    %p48 = scmp.eq.s32.totalorder %s47, 0
    %s50 = sadd.s32 %s49, 1
    %s51 = scalar_select %p48, %s49, %s50
    %p54 = pneg %p48
    %p55 = scmp.eq.s32.totalorder %s9, 3
    %p56 = por %p54, %p55
    %p57 = scmp.ne.s32.totalorder %s49, %s52
    %p58 = scmp.eq.s32.totalorder %s9, 0
    %p59 = por %p57, %p58
    %p60 = scmp.ne.s32.totalorder %s49, %s52
    %p61 = scmp.eq.s32.totalorder %s14, 3
    %p62 = por %p60, %p61
    %p63 = scmp.ne.s32.totalorder %s52, %s53
    %p64 = scmp.eq.s32.totalorder %s14, 0
    %p65 = por %p63, %p64
    %p66 = scmp.ne.s32.totalorder %s52, %s53
    %p67 = scmp.eq.s32.totalorder %s15, 3
    %p68 = por %p66, %p67
    %p70 = scmp.ne.s32.totalorder %s53, %s69
    %p71 = scmp.eq.s32.totalorder %s15, 0
    %p72 = por %p70, %p71
    %s73 = ssub.s32 %s16, %s42
    %s74 = ssub.s32 %s17, %s38
    %s75 = sor.u32 %s73, %s74
    %s76 = ssub.s32 %s19, %s30
    %s77 = sor.u32 %s75, %s76
    %p78 = scmp.eq.s32.totalorder %s77, 0
    %s80 = sadd.s32 %s79, 1
    %s81 = scalar_select %p78, %s79, %s80
    %p84 = pneg %p78
    %p85 = scmp.eq.s32.totalorder %s9, 3
    %p86 = por %p84, %p85
    %p87 = scmp.ne.s32.totalorder %s79, %s82
    %p88 = scmp.eq.s32.totalorder %s9, 0
    %p89 = por %p87, %p88
    %p90 = scmp.ne.s32.totalorder %s79, %s82
    %p91 = scmp.eq.s32.totalorder %s14, 3
    %p92 = por %p90, %p91
    %p93 = scmp.ne.s32.totalorder %s82, %s83
    %p94 = scmp.eq.s32.totalorder %s14, 0
    %p95 = por %p93, %p94
    %p96 = scmp.ne.s32.totalorder %s82, %s83
    %p97 = scmp.eq.s32.totalorder %s15, 3
    %p98 = por %p96, %p97
    %p100 = scmp.ne.s32.totalorder %s83, %s99
    %p101 = scmp.eq.s32.totalorder %s15, 0
    %p102 = por %p100, %p101
    %s103 = ssub.s32 %s16, %s42
    %s104 = ssub.s32 %s17, %s38
    %s105 = sor.u32 %s103, %s104
    %s106 = ssub.s32 %s19, %s30
    %s107 = sor.u32 %s105, %s106
    %p108 = scmp.eq.s32.totalorder %s107, 0
    %s110 = sadd.s32 %s109, 1
    %s111 = scalar_select %p108, %s109, %s110
    %p114 = pneg %p108
    %p115 = scmp.eq.s32.totalorder %s9, 3
    %p116 = por %p114, %p115
    %p117 = scmp.ne.s32.totalorder %s109, %s112
    %p118 = scmp.eq.s32.totalorder %s9, 0
    %p119 = por %p117, %p118
    %p120 = scmp.ne.s32.totalorder %s109, %s112
    %p121 = scmp.eq.s32.totalorder %s14, 3
    %p122 = por %p120, %p121
    %p123 = scmp.ne.s32.totalorder %s112, %s113
    %p124 = scmp.eq.s32.totalorder %s14, 0
    %p125 = por %p123, %p124
    %p126 = scmp.ne.s32.totalorder %s112, %s113
    %p127 = scmp.eq.s32.totalorder %s15, 3
    %p128 = por %p126, %p127
    %p130 = scmp.ne.s32.totalorder %s113, %s129
    %p131 = scmp.eq.s32.totalorder %s15, 0
    %p132 = por %p130, %p131
    %s133 = ssub.s32 %s16, %s42
    %s134 = ssub.s32 %s17, %s38
    %s135 = sor.u32 %s133, %s134
    %s136 = ssub.s32 %s18, %s34
    %s137 = sor.u32 %s135, %s136
    %p138 = scmp.eq.s32.totalorder %s137, 0
    %s140 = sadd.s32 %s139, 1
    %s141 = scalar_select %p138, %s139, %s140
    %p144 = pneg %p138
    %p145 = scmp.eq.s32.totalorder %s9, 3
    %p146 = por %p144, %p145
    %p147 = scmp.ne.s32.totalorder %s139, %s142
    %p148 = scmp.eq.s32.totalorder %s9, 0
    %p149 = por %p147, %p148
    %p150 = scmp.ne.s32.totalorder %s139, %s142
    %p151 = scmp.eq.s32.totalorder %s14, 3
    %p152 = por %p150, %p151
    %p153 = scmp.ne.s32.totalorder %s142, %s143
    %p154 = scmp.eq.s32.totalorder %s14, 0
    %p155 = por %p153, %p154
    %p156 = scmp.ne.s32.totalorder %s142, %s143
    %p157 = scmp.eq.s32.totalorder %s15, 3
    %p158 = por %p156, %p157
    %p160 = scmp.ne.s32.totalorder %s143, %s159
    %p161 = scmp.eq.s32.totalorder %s15, 0
    %p162 = por %p160, %p161
    %p163 = scmp.le.s32.totalorder 1, %s9
    %p164 = scmp.lt.s32.totalorder %s9, 5
    %p165 = pnand %p163, %p164
    %p166 = pneg %p165
    // Predicated region
    $region9: #{transformer_decoder_layer.10} parent=5 // pred_check
      _
    $region10: #{transformer_decoder_layer.10} parent=5 // pred_check_branch
      %168 = sbr.rel (%p165) target = $region12
    $region11: #{transformer_decoder_layer.10} parent=5 // pred_region
      %s169 = ssub.s32 %s9, 1
    $region12: #{transformer_decoder_layer.10} parent=5 // pred_fallthru
      _
    %p170 = scmp.lt.s32.totalorder %s9, 4
    // Predicated region
    $region13: #{transformer_decoder_layer.10} parent=5 // pred_check
      %p171 = pneg %p170
    $region14: #{transformer_decoder_layer.10} parent=5 // pred_check_branch
      %173 = sbr.rel (%p171) target = $region16
    $region15: #{transformer_decoder_layer.10} parent=5 // pred_region
      // Predicated region
      $region17: #{transformer_decoder_layer.10} parent=15 // pred_check
        %p174 = pneg %p59
      $region18: #{transformer_decoder_layer.10} parent=15 // pred_check_branch
        %176 = sbr.rel (%p174) target = $region20
      $region19: #{transformer_decoder_layer.10} parent=15 // pred_region
        %p177 = scmp.lt.s32.totalorder %s16, 1
        %s178 = scalar_select %p177, %s16, 1
        %p179 = scmp.lt.s32.totalorder %s17, 1
        %s180 = scalar_select %p179, %s17, 1
        %p181 = scmp.lt.s32.totalorder %s18, 0
        %s182 = scalar_select %p181, %s18, 0
        %s183 = sadd.s32 %s182, %s180
        %s184 = smul.addr %s178, 2
        %s185 = sadd.s32 %s183, %s184
        %s186 = smul.addr %s185, 8
        %s187 = scalar_lea.vmem %s0, %s186
      $region20: #{transformer_decoder_layer.10} parent=15 // pred_fallthru
        _
      // Predicated region
      $region21: #{transformer_decoder_layer.10} parent=15 // pred_check
        %p188 = pneg %p89
      $region22: #{transformer_decoder_layer.10} parent=15 // pred_check_branch
        %190 = sbr.rel (%p188) target = $region24
      $region23: #{transformer_decoder_layer.10} parent=15 // pred_region
        %p191 = scmp.lt.s32.totalorder %s16, 1
        %s192 = scalar_select %p191, %s16, 1
        %p193 = scmp.lt.s32.totalorder %s17, 1
        %s194 = scalar_select %p193, %s17, 1
        %p195 = scmp.lt.s32.totalorder %s19, 0
        %s196 = scalar_select %p195, %s19, 0
        %s197 = sadd.s32 %s196, %s194
        %s198 = smul.addr %s192, 2
        %s199 = sadd.s32 %s197, %s198
        %s200 = smul.addr %s199, 8
        %s201 = scalar_lea.vmem %s1, %s200
      $region24: #{transformer_decoder_layer.10} parent=15 // pred_fallthru
        _
      // Predicated region
      $region25: #{transformer_decoder_layer.10} parent=15 // pred_check
        %p202 = pneg %p119
      $region26: #{transformer_decoder_layer.10} parent=15 // pred_check_branch
        %204 = sbr.rel (%p202) target = $region28
      $region27: #{transformer_decoder_layer.10} parent=15 // pred_region
        %p205 = scmp.lt.s32.totalorder %s16, 1
        %s206 = scalar_select %p205, %s16, 1
        %p207 = scmp.lt.s32.totalorder %s17, 1
        %s208 = scalar_select %p207, %s17, 1
        %p209 = scmp.lt.s32.totalorder %s19, 0
        %s210 = scalar_select %p209, %s19, 0
        %s211 = sadd.s32 %s210, %s208
        %s212 = smul.addr %s206, 2
        %s213 = sadd.s32 %s211, %s212
        %s214 = smul.addr %s213, 8
        %s215 = scalar_lea.vmem %s2, %s214
      $region28: #{transformer_decoder_layer.10} parent=15 // pred_fallthru
        _
    $region16: #{transformer_decoder_layer.10} parent=5 // pred_fallthru
      _
    %p216 = scmp.le.s32.totalorder 1, %s9
    %p217 = scmp.lt.s32.totalorder %s9, 5
    %p218 = pnand %p216, %p217
    %p219 = pneg %p218
    // Predicated region
    $region29: #{transformer_decoder_layer.10} parent=5 // pred_check
      _
    $region30: #{transformer_decoder_layer.10} parent=5 // pred_check_branch
      %221 = sbr.rel (%p218) target = $region32
    $region31: #{transformer_decoder_layer.10} parent=5 // pred_region
      %s222 = ssub.s32 %s9, 1
      %p223 = scmp.lt.s32.totalorder %s20, 1
      %s224 = scalar_select %p223, %s20, 1
      %p225 = scmp.lt.s32.totalorder %s21, 1
      %s226 = scalar_select %p225, %s21, 1
      %p227 = scmp.lt.s32.totalorder %s22, 0
      %s228 = scalar_select %p227, %s22, 0
      %s229 = sadd.s32 %s228, %s226
      %s230 = smul.addr %s224, 2
      %s231 = sadd.s32 %s229, %s230
      %s232 = smul.addr %s231, 8
      %s233 = scalar_lea.vmem %s0, %s232
      %p234 = pneg %p65
      %p235 = pneg %p62
      %p236 = scmp.lt.s32.totalorder %s20, 1
      %s237 = scalar_select %p236, %s20, 1
      %p238 = scmp.lt.s32.totalorder %s21, 1
      %s239 = scalar_select %p238, %s21, 1
      %p240 = scmp.lt.s32.totalorder %s23, 0
      %s241 = scalar_select %p240, %s23, 0
      %s242 = sadd.s32 %s241, %s239
      %s243 = smul.addr %s237, 2
      %s244 = sadd.s32 %s242, %s243
      %s245 = smul.addr %s244, 8
      %s246 = scalar_lea.vmem %s1, %s245
      %p247 = pneg %p95
      %p248 = pneg %p92
      %p249 = scmp.lt.s32.totalorder %s20, 1
      %s250 = scalar_select %p249, %s20, 1
      %p251 = scmp.lt.s32.totalorder %s21, 1
      %s252 = scalar_select %p251, %s21, 1
      %p253 = scmp.lt.s32.totalorder %s23, 0
      %s254 = scalar_select %p253, %s23, 0
      %s255 = sadd.s32 %s254, %s252
      %s256 = smul.addr %s250, 2
      %s257 = sadd.s32 %s255, %s256
      %s258 = smul.addr %s257, 8
      %s259 = scalar_lea.vmem %s2, %s258
      %p260 = pneg %p125
      %p261 = pneg %p122
      %p262 = pneg %p155
      %p263 = pneg %p152
      %p264 = scmp.lt.s32.totalorder %s20, 1
      %s265 = scalar_select %p264, %s20, 1
      %p266 = scmp.lt.s32.totalorder %s21, 1
      %s267 = scalar_select %p266, %s21, 1
      %p268 = scmp.lt.s32.totalorder %s22, 0
      %s269 = scalar_select %p268, %s22, 0
      %s270 = sadd.s32 %s269, %s267
      %s271 = smul.addr %s265, 2
      %s272 = sadd.s32 %s270, %s271
      %s273 = smul.addr %s272, 8
      %s274 = scalar_lea.vmem %s3, %s273
      %p275 = scmp.lt.s32.totalorder %s20, 1
      %s276 = scalar_select %p275, %s20, 1
      %p277 = scmp.lt.s32.totalorder %s21, 1
      %s278 = scalar_select %p277, %s21, 1
      %p279 = scmp.lt.s32.totalorder %s22, 0
      %s280 = scalar_select %p279, %s22, 0
      %s281 = sadd.s32 %s280, %s278
      %s282 = smul.addr %s276, 2
      %s283 = sadd.s32 %s281, %s282
      %s284 = smul.addr %s283, 8
      %s285 = scalar_lea.vmem %s0, %s284
      %p286 = scmp.lt.s32.totalorder %s20, 1
      %s287 = scalar_select %p286, %s20, 1
      %p288 = scmp.lt.s32.totalorder %s21, 1
      %s289 = scalar_select %p288, %s21, 1
      %p290 = scmp.lt.s32.totalorder %s23, 0
      %s291 = scalar_select %p290, %s23, 0
      %s292 = sadd.s32 %s291, %s289
      %s293 = smul.addr %s287, 2
      %s294 = sadd.s32 %s292, %s293
      %s295 = smul.addr %s294, 8
      %s296 = scalar_lea.vmem %s1, %s295
      %p297 = scmp.lt.s32.totalorder %s20, 1
      %s298 = scalar_select %p297, %s20, 1
      %p299 = scmp.lt.s32.totalorder %s21, 1
      %s300 = scalar_select %p299, %s21, 1
      %p301 = scmp.lt.s32.totalorder %s23, 0
      %s302 = scalar_select %p301, %s23, 0
      %s303 = sadd.s32 %s302, %s300
      %s304 = smul.addr %s298, 2
      %s305 = sadd.s32 %s303, %s304
      %s306 = smul.addr %s305, 8
      %s307 = scalar_lea.vmem %s2, %s306
      %p308 = scmp.lt.s32.totalorder %s20, 1
      %s309 = scalar_select %p308, %s20, 1
      %p310 = scmp.lt.s32.totalorder %s21, 1
      %s311 = scalar_select %p310, %s21, 1
      %p312 = scmp.lt.s32.totalorder %s22, 0
      %s313 = scalar_select %p312, %s22, 0
      %s314 = sadd.s32 %s313, %s311
      %s315 = smul.addr %s309, 2
      %s316 = sadd.s32 %s314, %s315
      %s317 = smul.addr %s316, 8
      %s318 = scalar_lea.vmem %s3, %s317
      %p319 = scmp.eq.s32.totalorder %s23, 0
      // Predicated region
      $region33: #{transformer_decoder_layer.10} parent=31 // pred_check
        %p320 = pneg %p319
      $region34: #{transformer_decoder_layer.10} parent=31 // pred_check_branch
        %322 = sbr.rel (%p320) target = $region36
      $region35: #{transformer_decoder_layer.10} parent=31 // pred_region
        %vm323 = vcmask 7168
        %324 = vst.msk [vmem:[#allocation2] sm:$0xff] %vm323, -inf
        %325 = vst.msk [vmem:[#allocation3] sm:$0xff] %vm323, 0.0
        %vm326 = vcmask 130048
        %327 = vst.msk [vmem:[#allocation4] sm:$0xff] %vm326, 0.0
      $region36: #{transformer_decoder_layer.10} parent=31 // pred_fallthru
        _
      %v328 = vld [vmem:[%s285] sm:$0xff]
      %v329 = vmul.f32 %v328, 0.25
      %v330 = vld [vmem:[%s296] sm:$0xff]
      %v331 = vld [vmem:[%s307] sm:$0xff]
      %vm332 = vcmask 130048
      %v334 = vsel %vm332, %v329, 0
      %v337 = vsel %vm332, %v330, 0
      %339 = vmatpush.xpose.msra.mxu0 0.0
      %340 = vmatpush.xpose.msra.mxu0 0.0
      %341 = vmatpush.xpose.msra.mxu0 0.0
      %342 = vmatpush.xpose.msra.mxu0 0.0
      %343 = vmatpush.xpose.msra.mxu0 0.0
      %344 = vmatpush.xpose.msra.mxu0 0.0
      %345 = vmatpush.xpose.msra.mxu0 0.0
      %346 = vmatpush.xpose.msra.mxu0 0.0
      %347 = vmatpush.xpose.msra.mxu0 0.0
      %348 = vmatpush.xpose.msra.mxu0 0.0
      %349 = vmatpush.xpose.msra.mxu0 0.0
      %350 = vmatpush.xpose.msra.mxu0 0.0
      %351 = vmatpush.xpose.msra.mxu0 0.0
      %352 = vmatpush.xpose.msra.mxu0 0.0
      %353 = vmatpush.xpose.msra.mxu0 0.0
      %354 = vmatpush.xpose.msra.mxu0 %v337
      %355 = vmatmul.f32.gmra.mxu0 %v334
      %v356 = vpop.f32.mrf.mxu0
      %v357 = vadd.f32 0.0, %v356
      %358 = vdwg.mxu0
      %v359 = vld [vmem:[#allocation2] sm:$0xff]
      %vm360 = vcmask 64512
      %v361 = vsel %vm360, %v357, -inf
      %362 = vmax.xlane.f32.xlu0 %v361
      %v363 = vpop.xlane.xlu0 %362
      %v364 = vmax.f32 %v359, %v363
      %v365 = vsub.f32 %v359, %v364
      %v366 = vmul.f32 %v365, 1.442695
      %v367 = vpow.pop %v366
      %369 = vset.pattern.permute.xlu0 0
      %370 = vperm.xlu0 %369, %v364
      %v371 = vpop.permute.xlu0 %370
      %v373 = vsub.f32 %v357, %v371
      %v374 = vmul.f32 %v373, 1.442695
      %v375 = vpow.pop %v374
      %v376 = vld [vmem:[#allocation3] sm:$0xff]
      %v377 = vmul.f32 %v367, %v376
      %v378 = vsel %vm360, %v375, 0.0
      %379 = vadd.xlane.f32.xlu0 %v378
      %v380 = vpop.xlane.xlu0 %379
      %v381 = vadd.f32 %v377, %v380
      %vm382 = vcmask 7168
      %383 = vst.msk [vmem:[#allocation3] sm:$0xff] %vm382, %v381
      %v384 = vld [vmem:[#allocation4] sm:$0xff]
      %386 = vset.pattern.permute.xlu0 0
      %387 = vperm.xlu0 %386, %v367
      %v388 = vpop.permute.xlu0 %387
      %v390 = vmul.f32 %v388, %v384
      %v392 = vsel %vm360, %v375, 0
      %394 = vmatpush.msra.mxu0 0.0
      %395 = vmatpush.msra.mxu0 0.0
      %396 = vmatpush.msra.mxu0 0.0
      %397 = vmatpush.msra.mxu0 0.0
      %398 = vmatpush.msra.mxu0 0.0
      %399 = vmatpush.msra.mxu0 0.0
      %400 = vmatpush.msra.mxu0 0.0
      %401 = vmatpush.msra.mxu0 0.0
      %402 = vmatpush.msra.mxu0 0.0
      %403 = vmatpush.msra.mxu0 0.0
      %404 = vmatpush.msra.mxu0 0.0
      %405 = vmatpush.msra.mxu0 0.0
      %406 = vmatpush.msra.mxu0 0.0
      %407 = vmatpush.msra.mxu0 0.0
      %408 = vmatpush.msra.mxu0 0.0
      %409 = vmatpush.msra.mxu0 %v331
      %410 = vmatmul.f32.gmra.mxu0 %v392
      %v411 = vpop.f32.mrf.mxu0
      %v412 = vadd.f32 0.0, %v411
      %413 = vdwg.mxu0
      %v414 = vadd.f32 %v390, %v412
      %415 = vst.msk [vmem:[#allocation4] sm:$0xff] %vm332, %v414
      %416 = vst.msk [vmem:[#allocation2] sm:$0xff] %vm382, %v364
      // Predicated region
      $region37: #{transformer_decoder_layer.10} parent=31 // pred_check
        %p417 = pneg %p319
      $region38: #{transformer_decoder_layer.10} parent=31 // pred_check_branch
        %419 = sbr.rel (%p417) target = $region40
      $region39: #{transformer_decoder_layer.10} parent=31 // pred_region
        %v420 = vld [vmem:[#allocation4] sm:$0xff]
        %v421 = vld [vmem:[#allocation3] sm:$0xff]
        %423 = vset.pattern.permute.xlu0 0
        %424 = vperm.xlu0 %423, %v421
        %v425 = vpop.permute.xlu0 %424
        %v427 = vrcp.pop %v425
        %v428 = vmul.f32 %v425, %v427
        %v429 = vsub.f32 1.0, %v428
        %v430 = vmul.f32 %v427, %v429
        %v431 = vadd.f32 %v427, %v430
        %vm432 = vweird.f32 %v425
        %vm433 = vweird.f32 %v427
        %vm434 = vmor %vm432, %vm433
        %v435 = vsel %vm434, %v427, %v431
        %v436 = vand.u32 2147483647, %v425
        %vm437 = vcmp.eq.f32.partialorder %v436, 8.507059e+37
        %v438 = vand.u32 %v425, 2147483648
        %v439 = vor.u32 1.1754944e-38, %v438
        %v440 = vsel %vm437, %v439, %v435
        %v441 = vmul.f32 %v420, %v440
        %442 = vst.msk [vmem:[%s318] sm:$0xff] %vm332, %v441
      $region40: #{transformer_decoder_layer.10} parent=31 // pred_fallthru
        _
      %p443 = scmp.lt.s32.totalorder %s20, 1
      %s444 = scalar_select %p443, %s20, 1
      %p445 = scmp.lt.s32.totalorder %s21, 1
      %s446 = scalar_select %p445, %s21, 1
      %p447 = scmp.lt.s32.totalorder %s22, 0
      %s448 = scalar_select %p447, %s22, 0
      %s449 = sadd.s32 %s448, %s446
      %s450 = smul.addr %s444, 2
      %s451 = sadd.s32 %s449, %s450
      %s452 = smul.addr %s451, 8
      %s453 = scalar_lea.vmem %s3, %s452
      // Predicated region
      $region41: #{transformer_decoder_layer.10} parent=31 // pred_check
        %p454 = pneg %p152
      $region42: #{transformer_decoder_layer.10} parent=31 // pred_check_branch
        %456 = sbr.rel (%p454) target = $region44
      $region43: #{transformer_decoder_layer.10} parent=31 // pred_region
        _
      $region44: #{transformer_decoder_layer.10} parent=31 // pred_fallthru
        _
    $region32: #{transformer_decoder_layer.10} parent=5 // pred_fallthru
      _
    %p457 = scmp.le.s32.totalorder 2, %s9
    // Predicated region
    $region45: #{transformer_decoder_layer.10} parent=5 // pred_check
      %p458 = pneg %p457
    $region46: #{transformer_decoder_layer.10} parent=5 // pred_check_branch
      %460 = sbr.rel (%p458) target = $region48
    $region47: #{transformer_decoder_layer.10} parent=5 // pred_region
      %s461 = ssub.s32 %s9, 2
      // Predicated region
      $region49: #{transformer_decoder_layer.10} parent=47 // pred_check
        %p462 = pneg %p158
      $region50: #{transformer_decoder_layer.10} parent=47 // pred_check_branch
        %464 = sbr.rel (%p462) target = $region52
      $region51: #{transformer_decoder_layer.10} parent=47 // pred_region
        %p465 = scmp.lt.s32.totalorder %s24, 1
        %s466 = scalar_select %p465, %s24, 1
        %p467 = scmp.lt.s32.totalorder %s25, 1
        %s468 = scalar_select %p467, %s25, 1
        %p469 = scmp.lt.s32.totalorder %s26, 0
        %s470 = scalar_select %p469, %s26, 0
        %s471 = sadd.s32 %s470, %s468
        %s472 = smul.addr %s466, 2
        %s473 = sadd.s32 %s471, %s472
        %s474 = smul.addr %s473, 8
        %s475 = scalar_lea.vmem %s3, %s474
      $region52: #{transformer_decoder_layer.10} parent=47 // pred_fallthru
        _
    $region48: #{transformer_decoder_layer.10} parent=5 // pred_fallthru
      _
  $region6: #{transformer_decoder_layer.10} parent=0 // loop_footer
    %s13 = sadd.s32 1, %s9
  $region7: #{transformer_decoder_layer.10} parent=0 // loop_footer_branch
    %8 = sbr.rel target = $region3
  $region8: #{transformer_decoder_layer.10} parent=0 // loop_exit
    _

// kernel: transformer_decoder_layer.12
$region0: #{transformer_decoder_layer.12}
  #allocation0 [shape = 'u32[]', space=smem, size = 0x4, offset = 0x4, fixed_abs, tag = 'smem constant byte address 0x4 - core index']
  #allocation1 [shape = 'u32[72,128]{1,0:T(1,128)}', space=vmem, size = 0x9000, scoped, tag = 'internal scratch']
  #allocation2 [shape = 'f32[16,32]{1,0:T(8,128)}', space=vmem, size = 0x2000, scoped, tag = 'scratch operand']
  %s0 = inlined_call_operand.vmem [shape: f32[16,32], index: 0, kind: input, shape index: {}]
  %s1 = inlined_call_operand.vmem [shape: f32[1,32], index: 1, kind: input, shape index: {}]
  %s2 = inlined_call_operand.vmem [shape: f32[1,32], index: 2, kind: input, shape index: {}]
  %s3 = inlined_call_operand.vmem [shape: f32[32,32], index: 3, kind: input, shape index: {}]
  %s4 = inlined_call_operand.vmem [shape: f32[16,32], index: 4, kind: output, shape index: {}]
  %s5 = sld [smem:[#allocation0]]
  $region30: #{transformer_decoder_layer.12} parent=0
    _
  %s7 = ssub.s32 1, %s5
  %s8 = scalar_select 0, %s7, %s5
  // Predicated region
  $region2: #{transformer_decoder_layer.12} parent=0 // pred_check
    _
  $region3: #{transformer_decoder_layer.12} parent=0 // pred_check_branch
    %10 = sbr.rel (0) target = $region5
  $region4: #{transformer_decoder_layer.12} parent=0 // pred_region
    _
  $region5: #{transformer_decoder_layer.12} parent=0 // pred_fallthru
    _
  // Predicated region
  $region6: #{transformer_decoder_layer.12} parent=0 // pred_check
    _
  $region7: #{transformer_decoder_layer.12} parent=0 // pred_check_branch
    %12 = sbr.rel (0) target = $region9
  $region8: #{transformer_decoder_layer.12} parent=0 // pred_region
    _
  $region9: #{transformer_decoder_layer.12} parent=0 // pred_fallthru
    _
  // Predicated region
  $region10: #{transformer_decoder_layer.12} parent=0 // pred_check
    _
  $region11: #{transformer_decoder_layer.12} parent=0 // pred_check_branch
    %14 = sbr.rel (0) target = $region13
  $region12: #{transformer_decoder_layer.12} parent=0 // pred_region
    _
  $region13: #{transformer_decoder_layer.12} parent=0 // pred_fallthru
    _
  // Predicated region
  $region14: #{transformer_decoder_layer.12} parent=0 // pred_check
    _
  $region15: #{transformer_decoder_layer.12} parent=0 // pred_check_branch
    %16 = sbr.rel (0) target = $region17
  $region16: #{transformer_decoder_layer.12} parent=0 // pred_region
    _
  $region17: #{transformer_decoder_layer.12} parent=0 // pred_fallthru
    _
  %p17 = scmp.eq.s32.totalorder 0, 0
  // Predicated region
  $region18: #{transformer_decoder_layer.12} parent=0 // pred_check
    %p18 = pneg %p17
  $region19: #{transformer_decoder_layer.12} parent=0 // pred_check_branch
    %20 = sbr.rel (%p18) target = $region21
  $region20: #{transformer_decoder_layer.12} parent=0 // pred_region
    %v21 = vld [vmem:[%s0] sm:$0xff]
    %v22 = vld [vmem:[%s0 + $0x8] sm:$0xff]
    %vm23 = vcmask 261120
    %v24 = vsel %vm23, %v21, 0.0
    %25 = vadd.xlane.f32.xlu0 %v24
    %v26 = vpop.xlane.xlu0 %25
    %v27 = vsel %vm23, %v22, 0.0
    %28 = vadd.xlane.f32.xlu0 %v27
    %v29 = vpop.xlane.xlu0 %28
    %v30 = vrcp.pop 32.0
    %v31 = vmul.f32 32.0, %v30
    %v32 = vsub.f32 1.0, %v31
    %v33 = vmul.f32 %v30, %v32
    %v34 = vadd.f32 %v30, %v33
    %vm35 = vweird.f32 %v30
    %v36 = vsel %vm35, %v30, %v34
    %v37 = vmul.f32 %v26, %v36
    %v38 = vmul.f32 %v29, %v36
    %v39 = vsub.f32 %v21, %v37
    %v40 = vsub.f32 %v22, %v38
    %v41 = vmul.f32 %v39, %v39
    %v42 = vmul.f32 %v40, %v40
    %v43 = vsel %vm23, %v41, 0.0
    %44 = vadd.xlane.f32.xlu0 %v43
    %v45 = vpop.xlane.xlu0 %44
    %v46 = vsel %vm23, %v42, 0.0
    %47 = vadd.xlane.f32.xlu0 %v46
    %v48 = vpop.xlane.xlu0 %47
    %v49 = vmul.f32 %v45, %v36
    %v50 = vmul.f32 %v48, %v36
    %v51 = vadd.f32 %v49, 1e-05
    %v52 = vadd.f32 %v50, 1e-05
    %v53 = vrsqrt.pop %v51
    %v54 = vmul.f32 %v53, %v51
    %v55 = vmul.f32 %v54, %v53
    %v56 = vmul.f32 0.5, %v55
    %v57 = vsub.f32 1.5, %v56
    %v58 = vmul.f32 %v53, %v57
    %vm59 = vweird.f32 %v51
    %vm60 = vweird.f32 %v53
    %vm61 = vmor %vm59, %vm60
    %v62 = vsel %vm61, %v53, %v58
    %v63 = vrsqrt.pop %v52
    %v64 = vmul.f32 %v63, %v52
    %v65 = vmul.f32 %v64, %v63
    %v66 = vmul.f32 0.5, %v65
    %v67 = vsub.f32 1.5, %v66
    %v68 = vmul.f32 %v63, %v67
    %vm69 = vweird.f32 %v52
    %vm70 = vweird.f32 %v63
    %vm71 = vmor %vm69, %vm70
    %v72 = vsel %vm71, %v63, %v68
    %v73 = vmul.f32 %v39, %v62
    %v74 = vmul.f32 %v40, %v72
    %v75 = vld [vmem:[%s1] sm:$0x1]
    %v77 = vperm.slane %v75, 0
    %v79 = vmul.f32 %v73, %v77
    %v80 = vmul.f32 %v74, %v77
    %v81 = vld [vmem:[%s2] sm:$0x1]
    %v83 = vperm.slane %v81, 0
    %v85 = vadd.f32 %v79, %v83
    %v86 = vadd.f32 %v80, %v83
    %87 = vst.msk [vmem:[#allocation2] sm:$0xff] %vm23, %v85
    %88 = vst.msk [vmem:[#allocation2 + $0x8] sm:$0xff] %vm23, %v86
  $region21: #{transformer_decoder_layer.12} parent=0 // pred_fallthru
    _
  %v89 = vld [vmem:[#allocation2] sm:$0xff]
  %v90 = vld [vmem:[#allocation2 + $0x8] sm:$0xff]
  %v91 = vld [vmem:[%s3] sm:$0xff]
  %v92 = vld [vmem:[%s3 + $0x8] sm:$0xff]
  %v93 = vld [vmem:[%s3 + $0x10] sm:$0xff]
  %v94 = vld [vmem:[%s3 + $0x18] sm:$0xff]
  %vm95 = vcmask 261120
  %v97 = vsel %vm95, %v89, 0
  %v100 = vsel %vm95, %v90, 0
  %102 = vmatpush.msra.mxu0 0.0
  %103 = vmatpush.msra.mxu0 0.0
  %104 = vmatpush.msra.mxu0 0.0
  %105 = vmatpush.msra.mxu0 0.0
  %106 = vmatpush.msra.mxu0 0.0
  %107 = vmatpush.msra.mxu0 0.0
  %108 = vmatpush.msra.mxu0 0.0
  %109 = vmatpush.msra.mxu0 0.0
  %110 = vmatpush.msra.mxu0 0.0
  %111 = vmatpush.msra.mxu0 0.0
  %112 = vmatpush.msra.mxu0 0.0
  %113 = vmatpush.msra.mxu0 0.0
  %114 = vmatpush.msra.mxu0 %v94
  %115 = vmatpush.msra.mxu0 %v93
  %116 = vmatpush.msra.mxu0 %v92
  %117 = vmatpush.msra.mxu0 %v91
  %118 = vmatmul.f32.gmra.mxu0 %v97
  %v119 = vpop.f32.mrf.mxu0
  %v120 = vadd.f32 0.0, %v119
  %121 = vmatmul.f32.gmra.mxu0 %v100
  %v122 = vpop.f32.mrf.mxu0
  %v123 = vadd.f32 0.0, %v122
  %124 = vdwg.mxu0
  %125 = vst.msk [vmem:[%s4] sm:$0xff] %vm95, %v120
  %126 = vst.msk [vmem:[%s4 + $0x8] sm:$0xff] %vm95, %v123
  // Predicated region
  $region22: #{transformer_decoder_layer.12} parent=0 // pred_check
    _
  $region23: #{transformer_decoder_layer.12} parent=0 // pred_check_branch
    %128 = sbr.rel (0) target = $region25
  $region24: #{transformer_decoder_layer.12} parent=0 // pred_region
    _
  $region25: #{transformer_decoder_layer.12} parent=0 // pred_fallthru
    _
  // Predicated region
  $region26: #{transformer_decoder_layer.12} parent=0 // pred_check
    _
  $region27: #{transformer_decoder_layer.12} parent=0 // pred_check_branch
    %130 = sbr.rel (0) target = $region29
  $region28: #{transformer_decoder_layer.12} parent=0 // pred_region
    _
  $region29: #{transformer_decoder_layer.12} parent=0 // pred_fallthru
    _

// kernel: transformer_decoder_layer.13
$region0: #{transformer_decoder_layer.13}
  #allocation0 [shape = 'u32[]', space=smem, size = 0x4, offset = 0x4, fixed_abs, tag = 'smem constant byte address 0x4 - core index']
  #allocation1 [shape = 'u32[72,128]{1,0:T(1,128)}', space=vmem, size = 0x9000, scoped, tag = 'internal scratch']
  #allocation2 [shape = 'f32[16,64]{1,0:T(8,128)}', space=vmem, size = 0x2000, scoped, tag = 'scratch operand']
  %s0 = inlined_call_operand.vmem [shape: f32[16,24], index: 0, kind: input, shape index: {}]
  %s1 = inlined_call_operand.vmem [shape: f32[24,64], index: 1, kind: input, shape index: {}]
  %s2 = inlined_call_operand.vmem [shape: f32[16,64], index: 2, kind: output, shape index: {}]
  %s3 = sld [smem:[#allocation0]]
  $region26: #{transformer_decoder_layer.13} parent=0
    _
  %s5 = ssub.s32 1, %s3
  %s6 = scalar_select 0, %s5, %s3
  // Predicated region
  $region2: #{transformer_decoder_layer.13} parent=0 // pred_check
    _
  $region3: #{transformer_decoder_layer.13} parent=0 // pred_check_branch
    %8 = sbr.rel (0) target = $region5
  $region4: #{transformer_decoder_layer.13} parent=0 // pred_region
    _
  $region5: #{transformer_decoder_layer.13} parent=0 // pred_fallthru
    _
  // Predicated region
  $region6: #{transformer_decoder_layer.13} parent=0 // pred_check
    _
  $region7: #{transformer_decoder_layer.13} parent=0 // pred_check_branch
    %10 = sbr.rel (0) target = $region9
  $region8: #{transformer_decoder_layer.13} parent=0 // pred_region
    _
  $region9: #{transformer_decoder_layer.13} parent=0 // pred_fallthru
    _
  %p11 = scmp.eq.s32.totalorder 0, 0
  // Predicated region
  $region10: #{transformer_decoder_layer.13} parent=0 // pred_check
    %p12 = pneg %p11
  $region11: #{transformer_decoder_layer.13} parent=0 // pred_check_branch
    %14 = sbr.rel (%p12) target = $region13
  $region12: #{transformer_decoder_layer.13} parent=0 // pred_region
    %vm15 = vcmask 523264
    %16 = vst.msk [vmem:[#allocation2] sm:$0xff] %vm15, 0.0
    %17 = vst.msk [vmem:[#allocation2 + $0x8] sm:$0xff] %vm15, 0.0
  $region13: #{transformer_decoder_layer.13} parent=0 // pred_fallthru
    _
  %v18 = vld [vmem:[#allocation2] sm:$0xff]
  %v19 = vld [vmem:[#allocation2 + $0x8] sm:$0xff]
  %v20 = vld [vmem:[%s0] sm:$0xff]
  %v21 = vld [vmem:[%s0 + $0x8] sm:$0xff]
  %v22 = vld [vmem:[%s1] sm:$0xff]
  %v23 = vld [vmem:[%s1 + $0x8] sm:$0xff]
  %v24 = vld [vmem:[%s1 + $0x10] sm:$0xff]
  %vm25 = vcmask 195584
  %v27 = vsel %vm25, %v20, 0
  %v30 = vsel %vm25, %v21, 0
  %32 = vmatpush.msra.mxu0 0.0
  %33 = vmatpush.msra.mxu0 0.0
  %34 = vmatpush.msra.mxu0 0.0
  %35 = vmatpush.msra.mxu0 0.0
  %36 = vmatpush.msra.mxu0 0.0
  %37 = vmatpush.msra.mxu0 0.0
  %38 = vmatpush.msra.mxu0 0.0
  %39 = vmatpush.msra.mxu0 0.0
  %40 = vmatpush.msra.mxu0 0.0
  %41 = vmatpush.msra.mxu0 0.0
  %42 = vmatpush.msra.mxu0 0.0
  %43 = vmatpush.msra.mxu0 0.0
  %44 = vmatpush.msra.mxu0 0.0
  %45 = vmatpush.msra.mxu0 %v24
  %46 = vmatpush.msra.mxu0 %v23
  %47 = vmatpush.msra.mxu0 %v22
  %48 = vmatmul.f32.gmra.mxu0 %v27
  %v49 = vpop.f32.mrf.mxu0
  %v50 = vadd.f32 0.0, %v49
  %51 = vmatmul.f32.gmra.mxu0 %v30
  %v52 = vpop.f32.mrf.mxu0
  %v53 = vadd.f32 0.0, %v52
  %54 = vdwg.mxu0
  %v55 = vadd.f32 %v18, %v50
  %v56 = vadd.f32 %v19, %v53
  %vm57 = vcmask 523264
  %58 = vst.msk [vmem:[#allocation2] sm:$0xff] %vm57, %v55
  %59 = vst.msk [vmem:[#allocation2 + $0x8] sm:$0xff] %vm57, %v56
  // Predicated region
  $region14: #{transformer_decoder_layer.13} parent=0 // pred_check
    %p60 = pneg %p11
  $region15: #{transformer_decoder_layer.13} parent=0 // pred_check_branch
    %62 = sbr.rel (%p60) target = $region17
  $region16: #{transformer_decoder_layer.13} parent=0 // pred_region
    %v63 = vld [vmem:[#allocation2] sm:$0xff]
    %v64 = vld [vmem:[#allocation2 + $0x8] sm:$0xff]
    %65 = vst.msk [vmem:[%s2] sm:$0xff] %vm57, %v63
    %66 = vst.msk [vmem:[%s2 + $0x8] sm:$0xff] %vm57, %v64
  $region17: #{transformer_decoder_layer.13} parent=0 // pred_fallthru
    _
  // Predicated region
  $region18: #{transformer_decoder_layer.13} parent=0 // pred_check
    _
  $region19: #{transformer_decoder_layer.13} parent=0 // pred_check_branch
    %68 = sbr.rel (0) target = $region21
  $region20: #{transformer_decoder_layer.13} parent=0 // pred_region
    _
  $region21: #{transformer_decoder_layer.13} parent=0 // pred_fallthru
    _
  // Predicated region
  $region22: #{transformer_decoder_layer.13} parent=0 // pred_check
    _
  $region23: #{transformer_decoder_layer.13} parent=0 // pred_check_branch
    %70 = sbr.rel (0) target = $region25
  $region24: #{transformer_decoder_layer.13} parent=0 // pred_region
    _
  $region25: #{transformer_decoder_layer.13} parent=0 // pred_fallthru
    _

// kernel: transformer_decoder_layer.17
$region0: #{transformer_decoder_layer.17}
  #allocation0 [shape = 'u32[]', space=smem, size = 0x4, offset = 0x4, fixed_abs, tag = 'smem constant byte address 0x4 - core index']
  #allocation1 [shape = 'u32[72,128]{1,0:T(1,128)}', space=vmem, size = 0x9000, scoped, tag = 'internal scratch']
  #allocation2 [shape = 'f32[16,32]{1,0:T(8,128)}', space=vmem, size = 0x2000, scoped, tag = 'scratch operand']
  %s0 = inlined_call_operand.vmem [shape: f32[16,128], index: 0, kind: input, shape index: {}]
  %s1 = inlined_call_operand.vmem [shape: f32[128,32], index: 1, kind: input, shape index: {}]
  %s2 = inlined_call_operand.vmem [shape: f32[1,32], index: 2, kind: input, shape index: {}]
  %s3 = inlined_call_operand.vmem [shape: f32[16,32], index: 3, kind: input, shape index: {}]
  %s4 = inlined_call_operand.hbm [shape: f32[16,32], index: 4, kind: output, shape index: {}]
  %s5 = sld [smem:[#allocation0]]
  $region34: #{transformer_decoder_layer.17} parent=0
    _
  %s7 = ssub.s32 1, %s5
  %s8 = scalar_select 0, %s7, %s5
  $region1: #{transformer_decoder_layer.17} parent=0
    #allocation3 [shape = 'u8[8192]{0}', space=vmem, size = 0x2000, scoped, tag = 'output window, operand 0, single buffered']
    #allocation4 [shape = 's32[1]{0}', space=sflag, size = 0x4, scoped, tag = 'scoped memory for transformer_decoder_layer.17']
    %9 = vsyncpa [#allocation4], 0
    // Predicated region
    $region2: #{transformer_decoder_layer.17} parent=1 // pred_check
      _
    $region3: #{transformer_decoder_layer.17} parent=1 // pred_check_branch
      %11 = sbr.rel (0) target = $region5
    $region4: #{transformer_decoder_layer.17} parent=1 // pred_region
      _
    $region5: #{transformer_decoder_layer.17} parent=1 // pred_fallthru
      _
    // Predicated region
    $region6: #{transformer_decoder_layer.17} parent=1 // pred_check
      _
    $region7: #{transformer_decoder_layer.17} parent=1 // pred_check_branch
      %13 = sbr.rel (0) target = $region9
    $region8: #{transformer_decoder_layer.17} parent=1 // pred_region
      _
    $region9: #{transformer_decoder_layer.17} parent=1 // pred_fallthru
      _
    // Predicated region
    $region10: #{transformer_decoder_layer.17} parent=1 // pred_check
      _
    $region11: #{transformer_decoder_layer.17} parent=1 // pred_check_branch
      %15 = sbr.rel (0) target = $region13
    $region12: #{transformer_decoder_layer.17} parent=1 // pred_region
      _
    $region13: #{transformer_decoder_layer.17} parent=1 // pred_fallthru
      _
    // Predicated region
    $region14: #{transformer_decoder_layer.17} parent=1 // pred_check
      _
    $region15: #{transformer_decoder_layer.17} parent=1 // pred_check_branch
      %17 = sbr.rel (0) target = $region17
    $region16: #{transformer_decoder_layer.17} parent=1 // pred_region
      _
    $region17: #{transformer_decoder_layer.17} parent=1 // pred_fallthru
      _
    %p18 = scmp.eq.s32.totalorder 0, 0
    // Predicated region
    $region18: #{transformer_decoder_layer.17} parent=1 // pred_check
      %p19 = pneg %p18
    $region19: #{transformer_decoder_layer.17} parent=1 // pred_check_branch
      %21 = sbr.rel (%p19) target = $region21
    $region20: #{transformer_decoder_layer.17} parent=1 // pred_region
      %vm22 = vcmask 261120
      %23 = vst.msk [vmem:[#allocation2] sm:$0xff] %vm22, 0.0
      %24 = vst.msk [vmem:[#allocation2 + $0x8] sm:$0xff] %vm22, 0.0
    $region21: #{transformer_decoder_layer.17} parent=1 // pred_fallthru
      _
    %v25 = vld [vmem:[#allocation2] sm:$0xff]
    %v26 = vld [vmem:[#allocation2 + $0x8] sm:$0xff]
    %v27 = vld [vmem:[%s0] sm:$0xff]
    %v28 = vld [vmem:[%s0 + $0x8] sm:$0xff]
    %v29 = vld [vmem:[%s1] sm:$0xff]
    %v30 = vld [vmem:[%s1 + $0x8] sm:$0xff]
    %v31 = vld [vmem:[%s1 + $0x10] sm:$0xff]
    %v32 = vld [vmem:[%s1 + $0x18] sm:$0xff]
    %v33 = vld [vmem:[%s1 + $0x20] sm:$0xff]
    %v34 = vld [vmem:[%s1 + $0x28] sm:$0xff]
    %v35 = vld [vmem:[%s1 + $0x30] sm:$0xff]
    %v36 = vld [vmem:[%s1 + $0x38] sm:$0xff]
    %v37 = vld [vmem:[%s1 + $0x40] sm:$0xff]
    %v38 = vld [vmem:[%s1 + $0x48] sm:$0xff]
    %v39 = vld [vmem:[%s1 + $0x50] sm:$0xff]
    %v40 = vld [vmem:[%s1 + $0x58] sm:$0xff]
    %v41 = vld [vmem:[%s1 + $0x60] sm:$0xff]
    %v42 = vld [vmem:[%s1 + $0x68] sm:$0xff]
    %v43 = vld [vmem:[%s1 + $0x70] sm:$0xff]
    %v44 = vld [vmem:[%s1 + $0x78] sm:$0xff]
    %45 = vmatpush.msra.mxu0 %v44
    %46 = vmatpush.msra.mxu0 %v43
    %47 = vmatpush.msra.mxu0 %v42
    %48 = vmatpush.msra.mxu0 %v41
    %49 = vmatpush.msra.mxu0 %v40
    %50 = vmatpush.msra.mxu0 %v39
    %51 = vmatpush.msra.mxu0 %v38
    %52 = vmatpush.msra.mxu0 %v37
    %53 = vmatpush.msra.mxu0 %v36
    %54 = vmatpush.msra.mxu0 %v35
    %55 = vmatpush.msra.mxu0 %v34
    %56 = vmatpush.msra.mxu0 %v33
    %57 = vmatpush.msra.mxu0 %v32
    %58 = vmatpush.msra.mxu0 %v31
    %59 = vmatpush.msra.mxu0 %v30
    %60 = vmatpush.msra.mxu0 %v29
    %61 = vmatmul.f32.gmra.mxu0 %v27
    %v62 = vpop.f32.mrf.mxu0
    %v63 = vadd.f32 0.0, %v62
    %64 = vmatmul.f32.gmra.mxu0 %v28
    %v65 = vpop.f32.mrf.mxu0
    %v66 = vadd.f32 0.0, %v65
    %67 = vdwg.mxu0
    %v68 = vadd.f32 %v25, %v63
    %v69 = vadd.f32 %v26, %v66
    %vm70 = vcmask 261120
    %71 = vst.msk [vmem:[#allocation2] sm:$0xff] %vm70, %v68
    %72 = vst.msk [vmem:[#allocation2 + $0x8] sm:$0xff] %vm70, %v69
    // Predicated region
    $region22: #{transformer_decoder_layer.17} parent=1 // pred_check
      %p73 = pneg %p18
    $region23: #{transformer_decoder_layer.17} parent=1 // pred_check_branch
      %75 = sbr.rel (%p73) target = $region25
    $region24: #{transformer_decoder_layer.17} parent=1 // pred_region
      %v76 = vld [vmem:[#allocation2] sm:$0xff]
      %v77 = vld [vmem:[#allocation2 + $0x8] sm:$0xff]
      %v78 = vld [vmem:[%s2] sm:$0x1]
      %v80 = vperm.slane %v78, 0
      %v82 = vadd.f32 %v76, %v80
      %v83 = vadd.f32 %v77, %v80
      %v84 = vld [vmem:[%s3] sm:$0xff]
      %v85 = vld [vmem:[%s3 + $0x8] sm:$0xff]
      %v86 = vadd.f32 %v82, %v84
      %v87 = vadd.f32 %v83, %v85
      %88 = vst.msk [vmem:[#allocation3] sm:$0xff] %vm70, %v86
      %89 = vst.msk [vmem:[#allocation3 + $0x8] sm:$0xff] %vm70, %v87
    $region25: #{transformer_decoder_layer.17} parent=1 // pred_fallthru
      _
    // Predicated region
    $region26: #{transformer_decoder_layer.17} parent=1 // pred_check
      _
    $region27: #{transformer_decoder_layer.17} parent=1 // pred_check_branch
      %91 = sbr.rel (0) target = $region29
    $region28: #{transformer_decoder_layer.17} parent=1 // pred_region
      %93 = vsyncadd [#allocation4], 0
      %s94 = sshll.u32 [#allocation3], 4
      %s95 = int_to_ptr.vmem [resolvable:$true] %s94
      %s96 = sshll.u32 %s4, 4
      %s97 = int_to_ptr.hbm [resolvable:$true] %s96
      %102 = dma.vmem_to_hbm [thread:$0]  %s95, 256, %s97, [#allocation4], 128, 128, 8
    $region29: #{transformer_decoder_layer.17} parent=1 // pred_fallthru
      _
    // Predicated region
    $region30: #{transformer_decoder_layer.17} parent=1 // pred_check
      _
    $region31: #{transformer_decoder_layer.17} parent=1 // pred_check_branch
      %104 = sbr.rel (0) target = $region33
    $region32: #{transformer_decoder_layer.17} parent=1 // pred_region
      %106 = dma.done [#allocation4], 256
    $region33: #{transformer_decoder_layer.17} parent=1 // pred_fallthru
      _
    %107 = vsyncpa [#allocation4], 1

// kernel: transformer_decoder_layer.16
$region0: #{transformer_decoder_layer.16}
  #allocation0 [shape = 'u32[]', space=smem, size = 0x4, offset = 0x4, fixed_abs, tag = 'smem constant byte address 0x4 - core index']
  #allocation1 [shape = 'u32[72,128]{1,0:T(1,128)}', space=vmem, size = 0x9000, scoped, tag = 'internal scratch']
  #allocation2 [shape = 'f32[16,32]{1,0:T(8,128)}', space=vmem, size = 0x2000, scoped, tag = 'scratch operand']
  %s0 = inlined_call_operand.vmem [shape: f32[16,32], index: 0, kind: input, shape index: {}]
  %s1 = inlined_call_operand.vmem [shape: f32[1,32], index: 1, kind: input, shape index: {}]
  %s2 = inlined_call_operand.vmem [shape: f32[1,32], index: 2, kind: input, shape index: {}]
  %s3 = inlined_call_operand.vmem [shape: f32[32,128], index: 3, kind: input, shape index: {}]
  %s4 = inlined_call_operand.vmem [shape: f32[1,128], index: 4, kind: input, shape index: {}]
  %s5 = inlined_call_operand.vmem [shape: f32[16,128], index: 5, kind: output, shape index: {}]
  %s6 = sld [smem:[#allocation0]]
  $region34: #{transformer_decoder_layer.16} parent=0
    _
  %s8 = ssub.s32 1, %s6
  %s9 = scalar_select 0, %s8, %s6
  // Predicated region
  $region2: #{transformer_decoder_layer.16} parent=0 // pred_check
    _
  $region3: #{transformer_decoder_layer.16} parent=0 // pred_check_branch
    %11 = sbr.rel (0) target = $region5
  $region4: #{transformer_decoder_layer.16} parent=0 // pred_region
    _
  $region5: #{transformer_decoder_layer.16} parent=0 // pred_fallthru
    _
  // Predicated region
  $region6: #{transformer_decoder_layer.16} parent=0 // pred_check
    _
  $region7: #{transformer_decoder_layer.16} parent=0 // pred_check_branch
    %13 = sbr.rel (0) target = $region9
  $region8: #{transformer_decoder_layer.16} parent=0 // pred_region
    _
  $region9: #{transformer_decoder_layer.16} parent=0 // pred_fallthru
    _
  // Predicated region
  $region10: #{transformer_decoder_layer.16} parent=0 // pred_check
    _
  $region11: #{transformer_decoder_layer.16} parent=0 // pred_check_branch
    %15 = sbr.rel (0) target = $region13
  $region12: #{transformer_decoder_layer.16} parent=0 // pred_region
    _
  $region13: #{transformer_decoder_layer.16} parent=0 // pred_fallthru
    _
  // Predicated region
  $region14: #{transformer_decoder_layer.16} parent=0 // pred_check
    _
  $region15: #{transformer_decoder_layer.16} parent=0 // pred_check_branch
    %17 = sbr.rel (0) target = $region17
  $region16: #{transformer_decoder_layer.16} parent=0 // pred_region
    _
  $region17: #{transformer_decoder_layer.16} parent=0 // pred_fallthru
    _
  // Predicated region
  $region18: #{transformer_decoder_layer.16} parent=0 // pred_check
    _
  $region19: #{transformer_decoder_layer.16} parent=0 // pred_check_branch
    %19 = sbr.rel (0) target = $region21
  $region20: #{transformer_decoder_layer.16} parent=0 // pred_region
    _
  $region21: #{transformer_decoder_layer.16} parent=0 // pred_fallthru
    _
  %p20 = scmp.eq.s32.totalorder 0, 0
  // Predicated region
  $region22: #{transformer_decoder_layer.16} parent=0 // pred_check
    %p21 = pneg %p20
  $region23: #{transformer_decoder_layer.16} parent=0 // pred_check_branch
    %23 = sbr.rel (%p21) target = $region25
  $region24: #{transformer_decoder_layer.16} parent=0 // pred_region
    %v24 = vld [vmem:[%s0] sm:$0xff]
    %v25 = vld [vmem:[%s0 + $0x8] sm:$0xff]
    %vm26 = vcmask 261120
    %v27 = vsel %vm26, %v24, 0.0
    %28 = vadd.xlane.f32.xlu0 %v27
    %v29 = vpop.xlane.xlu0 %28
    %v30 = vsel %vm26, %v25, 0.0
    %31 = vadd.xlane.f32.xlu0 %v30
    %v32 = vpop.xlane.xlu0 %31
    %v33 = vrcp.pop 32.0
    %v34 = vmul.f32 32.0, %v33
    %v35 = vsub.f32 1.0, %v34
    %v36 = vmul.f32 %v33, %v35
    %v37 = vadd.f32 %v33, %v36
    %vm38 = vweird.f32 %v33
    %v39 = vsel %vm38, %v33, %v37
    %v40 = vmul.f32 %v29, %v39
    %v41 = vmul.f32 %v32, %v39
    %v42 = vsub.f32 %v24, %v40
    %v43 = vsub.f32 %v25, %v41
    %v44 = vmul.f32 %v42, %v42
    %v45 = vmul.f32 %v43, %v43
    %v46 = vsel %vm26, %v44, 0.0
    %47 = vadd.xlane.f32.xlu0 %v46
    %v48 = vpop.xlane.xlu0 %47
    %v49 = vsel %vm26, %v45, 0.0
    %50 = vadd.xlane.f32.xlu0 %v49
    %v51 = vpop.xlane.xlu0 %50
    %v52 = vmul.f32 %v48, %v39
    %v53 = vmul.f32 %v51, %v39
    %v54 = vadd.f32 %v52, 1e-05
    %v55 = vadd.f32 %v53, 1e-05
    %v56 = vrsqrt.pop %v54
    %v57 = vmul.f32 %v56, %v54
    %v58 = vmul.f32 %v57, %v56
    %v59 = vmul.f32 0.5, %v58
    %v60 = vsub.f32 1.5, %v59
    %v61 = vmul.f32 %v56, %v60
    %vm62 = vweird.f32 %v54
    %vm63 = vweird.f32 %v56
    %vm64 = vmor %vm62, %vm63
    %v65 = vsel %vm64, %v56, %v61
    %v66 = vrsqrt.pop %v55
    %v67 = vmul.f32 %v66, %v55
    %v68 = vmul.f32 %v67, %v66
    %v69 = vmul.f32 0.5, %v68
    %v70 = vsub.f32 1.5, %v69
    %v71 = vmul.f32 %v66, %v70
    %vm72 = vweird.f32 %v55
    %vm73 = vweird.f32 %v66
    %vm74 = vmor %vm72, %vm73
    %v75 = vsel %vm74, %v66, %v71
    %v76 = vmul.f32 %v42, %v65
    %v77 = vmul.f32 %v43, %v75
    %v78 = vld [vmem:[%s1] sm:$0x1]
    %v80 = vperm.slane %v78, 0
    %v82 = vmul.f32 %v76, %v80
    %v83 = vmul.f32 %v77, %v80
    %v84 = vld [vmem:[%s2] sm:$0x1]
    %v86 = vperm.slane %v84, 0
    %v88 = vadd.f32 %v82, %v86
    %v89 = vadd.f32 %v83, %v86
    %90 = vst.msk [vmem:[#allocation2] sm:$0xff] %vm26, %v88
    %91 = vst.msk [vmem:[#allocation2 + $0x8] sm:$0xff] %vm26, %v89
  $region25: #{transformer_decoder_layer.16} parent=0 // pred_fallthru
    _
  %v92 = vld [vmem:[#allocation2] sm:$0xff]
  %v93 = vld [vmem:[#allocation2 + $0x8] sm:$0xff]
  %v94 = vld [vmem:[%s3] sm:$0xff]
  %v95 = vld [vmem:[%s3 + $0x8] sm:$0xff]
  %v96 = vld [vmem:[%s3 + $0x10] sm:$0xff]
  %v97 = vld [vmem:[%s3 + $0x18] sm:$0xff]
  %v98 = vld [vmem:[%s4] sm:$0x1]
  %v100 = vperm.slane %v98, 0
  %vm102 = vcmask 261120
  %v104 = vsel %vm102, %v92, 0
  %v107 = vsel %vm102, %v93, 0
  %109 = vmatpush.msra.mxu0 0.0
  %110 = vmatpush.msra.mxu0 0.0
  %111 = vmatpush.msra.mxu0 0.0
  %112 = vmatpush.msra.mxu0 0.0
  %113 = vmatpush.msra.mxu0 0.0
  %114 = vmatpush.msra.mxu0 0.0
  %115 = vmatpush.msra.mxu0 0.0
  %116 = vmatpush.msra.mxu0 0.0
  %117 = vmatpush.msra.mxu0 0.0
  %118 = vmatpush.msra.mxu0 0.0
  %119 = vmatpush.msra.mxu0 0.0
  %120 = vmatpush.msra.mxu0 0.0
  %121 = vmatpush.msra.mxu0 %v97
  %122 = vmatpush.msra.mxu0 %v96
  %123 = vmatpush.msra.mxu0 %v95
  %124 = vmatpush.msra.mxu0 %v94
  %125 = vmatmul.f32.gmra.mxu0 %v104
  %v126 = vpop.f32.mrf.mxu0
  %v127 = vadd.f32 %v100, %v126
  %128 = vmatmul.f32.gmra.mxu0 %v107
  %v129 = vpop.f32.mrf.mxu0
  %v130 = vadd.f32 %v100, %v129
  %131 = vdwg.mxu0
  %v132 = vmul.f32 %v127, 0.5
  %v133 = vmul.f32 %v130, 0.5
  %v134 = vmul.f32 %v127, 0.044715
  %v135 = vmul.f32 %v130, 0.044715
  %v136 = vmul.f32 %v134, %v127
  %v137 = vmul.f32 %v135, %v130
  %v138 = vmul.f32 %v136, %v127
  %v139 = vmul.f32 %v137, %v130
  %v140 = vadd.f32 %v127, %v138
  %v141 = vadd.f32 %v130, %v139
  %v142 = vmul.f32 %v140, 0.7978846
  %v143 = vmul.f32 %v141, 0.7978846
  %v144 = vtanh.pop %v142
  %v145 = vtanh.pop %v143
  %v146 = vadd.f32 %v144, 1.0
  %v147 = vadd.f32 %v145, 1.0
  %v148 = vmul.f32 %v132, %v146
  %v149 = vmul.f32 %v133, %v147
  %150 = vst [vmem:[%s5] sm:$0xff] %v148
  %151 = vst [vmem:[%s5 + $0x8] sm:$0xff] %v149
  // Predicated region
  $region26: #{transformer_decoder_layer.16} parent=0 // pred_check
    _
  $region27: #{transformer_decoder_layer.16} parent=0 // pred_check_branch
    %153 = sbr.rel (0) target = $region29
  $region28: #{transformer_decoder_layer.16} parent=0 // pred_region
    _
  $region29: #{transformer_decoder_layer.16} parent=0 // pred_fallthru
    _
  // Predicated region
  $region30: #{transformer_decoder_layer.16} parent=0 // pred_check
    _
  $region31: #{transformer_decoder_layer.16} parent=0 // pred_check_branch
    %155 = sbr.rel (0) target = $region33
  $region32: #{transformer_decoder_layer.16} parent=0 // pred_region
    _
  $region33: #{transformer_decoder_layer.16} parent=0 // pred_fallthru
    _

</llo_original>
